<compile_context>
chip_gen: v5e
topology: v5e:2x2
jax: 0.10.0
libtpu: 0.0.40
codegen_flags: <defaults>
</compile_context>

<pallas_src>
import functools
import math

import jax
import jax.numpy as jnp
from jax.experimental import pallas as pl
from jax.experimental.pallas import tpu as pltpu

EPS = 1e-5          # nn.BatchNorm1d default eps
NEG_SLOPE = 0.2     # nn.LeakyReLU(negative_slope=0.2)


def p2p_attention_kernel(x_ref, wqkv_ref, wf1_ref, wf2_ref, bnp_ref,
                         o_ref, x2d_ref, acc_ref, *,
                         num_heads, q_out, k_out, v_out):
    B, C, N = x_ref.shape
    BN = B * N
    dq = q_out // num_heads     # q_depth == k_depth
    dv = v_out // num_heads     # v_depth

    # ---- Fuse batch onto the lane axis inside VMEM: (B, C, N) -> (C, B*N).
    for b in range(B):
        x2d_ref[:, b * N:(b + 1) * N] = x_ref[b].astype(jnp.float32)
    x2d = x2d_ref[...]

    # ---- Fused QKV projection: one MXU matmul, bf16 operands, f32 accumulate.
    qkv = jnp.dot(wqkv_ref[...].astype(jnp.bfloat16),
                  x2d.astype(jnp.bfloat16),
                  preferred_element_type=jnp.float32)          # (q+k+v, B*N)
    q = qkv[0:q_out, :]                       # 1/sqrt(dq) already folded in wq
    k = qkv[q_out:q_out + k_out, :]
    v = qkv[q_out + k_out:q_out + k_out + v_out, :]

    # ---- Per-(batch, head) attention, statically unrolled (B*H = 4 iters).
    # Head outputs are written straight into the acc_ref scratch slab
    # (tile-aligned slices, no concat/stack copies).
    for b in range(B):
        for h in range(num_heads):
            qh = q[h * dq:(h + 1) * dq, b * N:(b + 1) * N].astype(jnp.bfloat16)
            kh = k[h * dq:(h + 1) * dq, b * N:(b + 1) * N].astype(jnp.bfloat16)
            vh = v[h * dv:(h + 1) * dv, b * N:(b + 1) * N].astype(jnp.bfloat16)

            # energy_t[m, n] = sum_d kh[d, m] * qh[d, n]
            # (keys m on sublanes, queries n on lanes) -> softmax over axis 0,
            # so the denominator comes out lane-indexed, matching out_h below.
            energy_t = jax.lax.dot_general(
                kh, qh, (((0,), (0,)), ((), ())),
                preferred_element_type=jnp.float32)            # (N, N) f32
            energy_t = energy_t - jnp.max(energy_t, axis=0, keepdims=True)
            p = jnp.exp(energy_t)                              # f32 (v5e-safe)
            denom = jnp.sum(p, axis=0, keepdims=True)          # (1, N)

            # out_h[d, n] = sum_m vh[d, m] * p[m, n]; normalize the small
            # (dv, N) result instead of the (N, N) probabilities.
            out_h = jax.lax.dot_general(
                vh, p.astype(jnp.bfloat16), (((1,), (0,)), ((), ())),
                preferred_element_type=jnp.float32)            # (dv, N)
            out_h = out_h * pl.reciprocal(denom, approx=True)
            acc_ref[pl.ds(h * dv, dv), pl.ds(b * N, N)] = out_h

    # ---- Residual + BN1 + FFN + Residual + BN2, all on the (·, B*N) slab.
    inv_n = 1.0 / BN
    g1 = bnp_ref[:, 0:1]
    b1 = bnp_ref[:, 1:2]
    g2 = bnp_ref[:, 2:3]
    b2 = bnp_ref[:, 3:4]

    def batchnorm(y, gamma, beta):
        # Training-mode nn.BatchNorm1d: biased batch stats over (batch, N),
        # computed in one pass (sum + sum of squares).
        s = jnp.sum(y, axis=1, keepdims=True)                  # (C, 1)
        ss = jnp.sum(y * y, axis=1, keepdims=True)             # (C, 1)
        mean = s * inv_n
        var = ss * inv_n - mean * mean
        return (y - mean) * jax.lax.rsqrt(var + EPS) * gamma + beta

    xbn1 = batchnorm(x2d + acc_ref[...], g1, b1)               # bn1(x + attn)

    # Feed-forward block (f32 matmuls: tiny K, keeps final accuracy).
    h1 = jnp.dot(wf1_ref[...], xbn1, preferred_element_type=jnp.float32)
    h1 = jnp.where(h1 >= 0, h1, NEG_SLOPE * h1)                # LeakyReLU(0.2)
    h2 = jnp.dot(wf2_ref[...], h1, preferred_element_type=jnp.float32)

    y2 = batchnorm(xbn1 + h2, g2, b2)                          # bn2(residual)

    # ---- Emit (B, v_out, N) directly: full 128-lane unmasked store per batch.
    for b in range(B):
        o_ref[b] = y2[:, b * N:(b + 1) * N].astype(o_ref.dtype)


def prepare_params(params, num_heads):
    """One-time parameter fusion — done OUTSIDE the per-call hot path."""
    q_out = params['wq'].shape[0]
    k_out = params['wk'].shape[0]
    v_out = params['wv'].shape[0]
    dq = q_out // num_heads
    # Fold the softmax scale 1/sqrt(dq) into the wq rows of the fused weight.
    wq_scaled = params['wq'] * jnp.float32(1.0 / math.sqrt(dq))
    wqkv = jnp.concatenate([wq_scaled, params['wk'], params['wv']], axis=0)
    # Pack the four (v_out, 1) BN affine params into one (v_out, 4) input.
    bnp = jnp.concatenate(
        [params['g1'], params['b1'], params['g2'], params['b2']], axis=1)
    return {'wqkv': wqkv, 'wf1': params['wf1'], 'wf2': params['wf2'],
            'bnp': bnp, 'q_out': q_out, 'k_out': k_out, 'v_out': v_out}


def point2point_attention(x, fused, num_heads):
    """Hot path: a single pallas_call, no wrapper-side layout ops."""
    B, C, N = x.shape
    q_out, k_out, v_out = fused['q_out'], fused['k_out'], fused['v_out']
    ffh = fused['wf1'].shape[0]
    dq, dv = q_out // num_heads, v_out // num_heads

    flops = (2 * (q_out + k_out + v_out) * C * B * N            # QKV
             + B * num_heads * (2 * N * N * dq + 2 * N * N * dv)  # attn core
             + 2 * ffh * v_out * B * N + 2 * v_out * ffh * B * N)  # FFN
    bytes_accessed = 4 * (x.size + fused['wqkv'].size + fused['wf1'].size
                          + fused['wf2'].size + fused['bnp'].size
                          + B * v_out * N)

    vmem = lambda: pl.BlockSpec(memory_space=pltpu.MemorySpace.VMEM)
    return pl.pallas_call(
        functools.partial(p2p_attention_kernel, num_heads=num_heads,
                          q_out=q_out, k_out=k_out, v_out=v_out),
        out_shape=jax.ShapeDtypeStruct((B, v_out, N), x.dtype),
        in_specs=[vmem() for _ in range(5)],
        out_specs=vmem(),
        scratch_shapes=[pltpu.VMEM((C, B * N), jnp.float32),       # fused x
                        pltpu.VMEM((v_out, B * N), jnp.float32)],  # attn out
        cost_estimate=pl.CostEstimate(
            flops=flops,
            transcendentals=B * num_heads * N * N,
            bytes_accessed=bytes_accessed),
    )(x, fused['wqkv'], fused['wf1'], fused['wf2'], fused['bnp'])


# ----------------------------- pure-JAX reference ---------------------------
def _batchnorm_ref(y, gamma, beta):
    mean = jnp.mean(y, axis=(0, 2), keepdims=True)
    var = jnp.mean((y - mean) ** 2, axis=(0, 2), keepdims=True)
    return (y - mean) * jax.lax.rsqrt(var + EPS) * gamma[None] + beta[None]


def ref_forward(x, params, num_heads):
    """Pure-JAX reference mirroring the PyTorch forward (asm='dot')."""
    B, C, N = x.shape
    q = jnp.einsum('oc,bcn->bon', params['wq'], x)
    k = jnp.einsum('oc,bcn->bon', params['wk'], x)
    v = jnp.einsum('oc,bcn->bon', params['wv'], x)
    dq = q.shape[1] // num_heads
    dv = v.shape[1] // num_heads
    qh = q.reshape(B, num_heads, dq, N).transpose(0, 1, 3, 2)   # (B,H,N,dq)
    kh = k.reshape(B, num_heads, dq, N)                         # (B,H,dq,N)
    vh = v.reshape(B, num_heads, dv, N)                         # (B,H,dv,N)
    energy = jnp.einsum('bhnd,bhdm->bhnm', qh, kh) / math.sqrt(dq)
    attn = jax.nn.softmax(energy, axis=-1)
    out = jnp.einsum('bhnm,bhdm->bhnd', attn, vh)               # attn @ v^T
    out = out.transpose(0, 2, 1, 3).reshape(B, N, num_heads * dv)
    out = out.transpose(0, 2, 1)                                # (B, v_out, N)
    y1 = _batchnorm_ref(x + out, params['g1'], params['b1'])
    h1 = jnp.einsum('oc,bcn->bon', params['wf1'], y1)
    h1 = jnp.where(h1 >= 0, h1, NEG_SLOPE * h1)
    h2 = jnp.einsum('oc,bcn->bon', params['wf2'], h1)
    return _batchnorm_ref(y1 + h2, params['g2'], params['b2'])


if __name__ == "__main__":
    # Small config consistent with the module's constraints:
    #   q_in == k_in == v_in == v_out (ResLink), q_out == k_out,
    #   all divisible by num_heads, ff: v_out -> hidden -> v_out.
    B, C, N = 2, 16, 128
    num_heads = 2
    q_out = k_out = 16
    v_out = 16
    ff_hidden = 32

    key = jax.random.PRNGKey(0)
    ks = jax.random.split(key, 6)
    params = {
        'wq': 0.1 * jax.random.normal(ks[0], (q_out, C), jnp.float32),
        'wk': 0.1 * jax.random.normal(ks[1], (k_out, C), jnp.float32),
        'wv': 0.1 * jax.random.normal(ks[2], (v_out, C), jnp.float32),
        'wf1': 0.1 * jax.random.normal(ks[3], (ff_hidden, v_out), jnp.float32),
        'wf2': 0.1 * jax.random.normal(ks[4], (v_out, ff_hidden), jnp.float32),
        # BatchNorm affine params: PyTorch default init (weight=1, bias=0).
        'g1': jnp.ones((v_out, 1), jnp.float32),
        'b1': jnp.zeros((v_out, 1), jnp.float32),
        'g2': jnp.ones((v_out, 1), jnp.float32),
        'b2': jnp.zeros((v_out, 1), jnp.float32),
    }
    x = jax.random.normal(ks[5], (B, C, N), jnp.float32)

    fused = prepare_params(params, num_heads)       # off the hot path
    out = point2point_attention(x, fused, num_heads)
    jax.block_until_ready(out)

    ref = ref_forward(x, params, num_heads)
    max_err = float(jnp.max(jnp.abs(out - ref)))
    # Tolerance loosened vs pure-f32: bf16 MXU operands + approx reciprocal
    # (accuracy/perf trade-off flagged in the review, not a bug).
    assert jnp.allclose(out, ref, atol=1e-2, rtol=1e-2), max_err
    print("KERNEL_OK")
</pallas_src>

<mosaic_0001>
module attributes {stable_mosaic.version = 11 : i64} {
  func.func @p2p_attention_kernel(%arg0: memref<2x16x128xf32, #tpu.memory_space<vmem>>, %arg1: memref<48x16xf32, #tpu.memory_space<vmem>>, %arg2: memref<32x16xf32, #tpu.memory_space<vmem>>, %arg3: memref<16x32xf32, #tpu.memory_space<vmem>>, %arg4: memref<16x4xf32, #tpu.memory_space<vmem>>, %arg5: memref<2x16x128xf32, #tpu.memory_space<vmem>>, %arg6: memref<16x256xf32, #tpu.memory_space<vmem>>, %arg7: memref<16x256xf32, #tpu.memory_space<vmem>>) attributes {dimension_semantics = [], scalar_prefetch = 0 : i64, scratch_operands = 2 : i64, tpu.core_type = #tpu.core_type<tc>} {
    %c0 = arith.constant 0 : index
    %c0_0 = arith.constant 0 : index
    %c0_1 = arith.constant 0 : index
    %0 = vector.load %arg0[%c0, %c0_0, %c0_1] : memref<2x16x128xf32, #tpu.memory_space<vmem>>, vector<1x16x128xf32>
    %1 = vector.shape_cast %0 : vector<1x16x128xf32> to vector<16x128xf32>
    %c0_2 = arith.constant 0 : index
    %c0_3 = arith.constant 0 : index
    %2 = vector.load %arg6[%c0_2, %c0_3] : memref<16x256xf32, #tpu.memory_space<vmem>>, vector<16x128xf32>
    tpu.vector_store %arg6[%c0_2, %c0_3], %1 {strides = array<i32>} : memref<16x256xf32, #tpu.memory_space<vmem>>, vector<16x128xf32>,
    %c1 = arith.constant 1 : index
    %c0_4 = arith.constant 0 : index
    %c0_5 = arith.constant 0 : index
    %3 = vector.load %arg0[%c1, %c0_4, %c0_5] : memref<2x16x128xf32, #tpu.memory_space<vmem>>, vector<1x16x128xf32>
    %4 = vector.shape_cast %3 : vector<1x16x128xf32> to vector<16x128xf32>
    %c0_6 = arith.constant 0 : index
    %c128 = arith.constant 128 : index
    %5 = vector.load %arg6[%c0_6, %c128] : memref<16x256xf32, #tpu.memory_space<vmem>>, vector<16x128xf32>
    tpu.vector_store %arg6[%c0_6, %c128], %4 {strides = array<i32>} : memref<16x256xf32, #tpu.memory_space<vmem>>, vector<16x128xf32>,
    %c0_7 = arith.constant 0 : index
    %c0_8 = arith.constant 0 : index
    %6 = vector.load %arg6[%c0_7, %c0_8] : memref<16x256xf32, #tpu.memory_space<vmem>>, vector<16x256xf32>
    %c0_9 = arith.constant 0 : index
    %c0_10 = arith.constant 0 : index
    %7 = vector.load %arg1[%c0_9, %c0_10] : memref<48x16xf32, #tpu.memory_space<vmem>>, vector<48x16xf32>
    %8 = arith.truncf %7 : vector<48x16xf32> to vector<48x16xbf16>
    %9 = arith.truncf %6 : vector<16x256xf32> to vector<16x256xbf16>
    %cst = arith.constant dense<0.000000e+00> : vector<48x256xf32>
    %10 = tpu.matmul %8, %9, %cst {dimension_numbers = #tpu.dot_dimension_numbers<[1], [0], [0], [1], [0, 0, 1, 1], [], []>} : vector<48x16xbf16>, vector<16x256xbf16>, vector<48x256xf32> -> vector<48x256xf32>
    %11 = vector.extract_strided_slice %10 {offsets = [0, 0], sizes = [16, 256], strides = [1, 1]} : vector<48x256xf32> to vector<16x256xf32>
    %12 = vector.extract_strided_slice %10 {offsets = [16, 0], sizes = [16, 256], strides = [1, 1]} : vector<48x256xf32> to vector<16x256xf32>
    %13 = vector.extract_strided_slice %10 {offsets = [32, 0], sizes = [16, 256], strides = [1, 1]} : vector<48x256xf32> to vector<16x256xf32>
    %14 = vector.extract_strided_slice %11 {offsets = [0, 0], sizes = [8, 128], strides = [1, 1]} : vector<16x256xf32> to vector<8x128xf32>
    %15 = arith.truncf %14 : vector<8x128xf32> to vector<8x128xbf16>
    %16 = vector.extract_strided_slice %12 {offsets = [0, 0], sizes = [8, 128], strides = [1, 1]} : vector<16x256xf32> to vector<8x128xf32>
    %17 = arith.truncf %16 : vector<8x128xf32> to vector<8x128xbf16>
    %18 = vector.extract_strided_slice %13 {offsets = [0, 0], sizes = [8, 128], strides = [1, 1]} : vector<16x256xf32> to vector<8x128xf32>
    %19 = arith.truncf %18 : vector<8x128xf32> to vector<8x128xbf16>
    %cst_11 = arith.constant dense<0.000000e+00> : vector<128x128xf32>
    %20 = tpu.matmul %17, %15, %cst_11 {dimension_numbers = #tpu.dot_dimension_numbers<[0], [0], [1], [1], [0, 1, 1, 1], [], []>} : vector<8x128xbf16>, vector<8x128xbf16>, vector<128x128xf32> -> vector<128x128xf32>
    %cst_12 = arith.constant dense<0xFF800000> : vector<128xf32>
    %21 = vector.multi_reduction <maximumf>, %20, %cst_12 [0] : vector<128x128xf32> to vector<128xf32>
    %22 = vector.shape_cast %21 : vector<128xf32> to vector<1x128xf32>
    %23 = vector.broadcast %22 : vector<1x128xf32> to vector<128x128xf32>
    %24 = arith.subf %20, %23 : vector<128x128xf32>
    %25 = math.exp %24 : vector<128x128xf32>
    %cst_13 = arith.constant dense<0.000000e+00> : vector<128xf32>
    %26 = vector.multi_reduction <add>, %25, %cst_13 [0] : vector<128x128xf32> to vector<128xf32>
    %27 = vector.shape_cast %26 : vector<128xf32> to vector<1x128xf32>
    %28 = arith.truncf %25 : vector<128x128xf32> to vector<128x128xbf16>
    %cst_14 = arith.constant dense<0.000000e+00> : vector<8x128xf32>
    %29 = tpu.matmul %19, %28, %cst_14 {dimension_numbers = #tpu.dot_dimension_numbers<[1], [0], [0], [1], [0, 0, 1, 1], [], []>} : vector<8x128xbf16>, vector<128x128xbf16>, vector<8x128xf32> -> vector<8x128xf32>
    %30 = tpu.reciprocal %27 {approx = true} : vector<1x128xf32> -> vector<1x128xf32>
    %31 = vector.broadcast %30 : vector<1x128xf32> to vector<8x128xf32>
    %32 = arith.mulf %29, %31 : vector<8x128xf32>
    %c0_15 = arith.constant 0 : index
    %c0_16 = arith.constant 0 : index
    %33 = vector.load %arg7[%c0_15, %c0_16] : memref<16x256xf32, #tpu.memory_space<vmem>>, vector<8x128xf32>
    tpu.vector_store %arg7[%c0_15, %c0_16], %32 {strides = array<i32>} : memref<16x256xf32, #tpu.memory_space<vmem>>, vector<8x128xf32>,
    %34 = vector.extract_strided_slice %11 {offsets = [8, 0], sizes = [8, 128], strides = [1, 1]} : vector<16x256xf32> to vector<8x128xf32>
    %35 = arith.truncf %34 : vector<8x128xf32> to vector<8x128xbf16>
    %36 = vector.extract_strided_slice %12 {offsets = [8, 0], sizes = [8, 128], strides = [1, 1]} : vector<16x256xf32> to vector<8x128xf32>
    %37 = arith.truncf %36 : vector<8x128xf32> to vector<8x128xbf16>
    %38 = vector.extract_strided_slice %13 {offsets = [8, 0], sizes = [8, 128], strides = [1, 1]} : vector<16x256xf32> to vector<8x128xf32>
    %39 = arith.truncf %38 : vector<8x128xf32> to vector<8x128xbf16>
    %cst_17 = arith.constant dense<0.000000e+00> : vector<128x128xf32>
    %40 = tpu.matmul %37, %35, %cst_17 {dimension_numbers = #tpu.dot_dimension_numbers<[0], [0], [1], [1], [0, 1, 1, 1], [], []>} : vector<8x128xbf16>, vector<8x128xbf16>, vector<128x128xf32> -> vector<128x128xf32>
    %cst_18 = arith.constant dense<0xFF800000> : vector<128xf32>
    %41 = vector.multi_reduction <maximumf>, %40, %cst_18 [0] : vector<128x128xf32> to vector<128xf32>
    %42 = vector.shape_cast %41 : vector<128xf32> to vector<1x128xf32>
    %43 = vector.broadcast %42 : vector<1x128xf32> to vector<128x128xf32>
    %44 = arith.subf %40, %43 : vector<128x128xf32>
    %45 = math.exp %44 : vector<128x128xf32>
    %cst_19 = arith.constant dense<0.000000e+00> : vector<128xf32>
    %46 = vector.multi_reduction <add>, %45, %cst_19 [0] : vector<128x128xf32> to vector<128xf32>
    %47 = vector.shape_cast %46 : vector<128xf32> to vector<1x128xf32>
    %48 = arith.truncf %45 : vector<128x128xf32> to vector<128x128xbf16>
    %cst_20 = arith.constant dense<0.000000e+00> : vector<8x128xf32>
    %49 = tpu.matmul %39, %48, %cst_20 {dimension_numbers = #tpu.dot_dimension_numbers<[1], [0], [0], [1], [0, 0, 1, 1], [], []>} : vector<8x128xbf16>, vector<128x128xbf16>, vector<8x128xf32> -> vector<8x128xf32>
    %50 = tpu.reciprocal %47 {approx = true} : vector<1x128xf32> -> vector<1x128xf32>
    %51 = vector.broadcast %50 : vector<1x128xf32> to vector<8x128xf32>
    %52 = arith.mulf %49, %51 : vector<8x128xf32>
    %c8 = arith.constant 8 : index
    %c0_21 = arith.constant 0 : index
    %53 = vector.load %arg7[%c8, %c0_21] : memref<16x256xf32, #tpu.memory_space<vmem>>, vector<8x128xf32>
    tpu.vector_store %arg7[%c8, %c0_21], %52 {strides = array<i32>} : memref<16x256xf32, #tpu.memory_space<vmem>>, vector<8x128xf32>,
    %54 = vector.extract_strided_slice %11 {offsets = [0, 128], sizes = [8, 128], strides = [1, 1]} : vector<16x256xf32> to vector<8x128xf32>
    %55 = arith.truncf %54 : vector<8x128xf32> to vector<8x128xbf16>
    %56 = vector.extract_strided_slice %12 {offsets = [0, 128], sizes = [8, 128], strides = [1, 1]} : vector<16x256xf32> to vector<8x128xf32>
    %57 = arith.truncf %56 : vector<8x128xf32> to vector<8x128xbf16>
    %58 = vector.extract_strided_slice %13 {offsets = [0, 128], sizes = [8, 128], strides = [1, 1]} : vector<16x256xf32> to vector<8x128xf32>
    %59 = arith.truncf %58 : vector<8x128xf32> to vector<8x128xbf16>
    %cst_22 = arith.constant dense<0.000000e+00> : vector<128x128xf32>
    %60 = tpu.matmul %57, %55, %cst_22 {dimension_numbers = #tpu.dot_dimension_numbers<[0], [0], [1], [1], [0, 1, 1, 1], [], []>} : vector<8x128xbf16>, vector<8x128xbf16>, vector<128x128xf32> -> vector<128x128xf32>
    %cst_23 = arith.constant dense<0xFF800000> : vector<128xf32>
    %61 = vector.multi_reduction <maximumf>, %60, %cst_23 [0] : vector<128x128xf32> to vector<128xf32>
    %62 = vector.shape_cast %61 : vector<128xf32> to vector<1x128xf32>
    %63 = vector.broadcast %62 : vector<1x128xf32> to vector<128x128xf32>
    %64 = arith.subf %60, %63 : vector<128x128xf32>
    %65 = math.exp %64 : vector<128x128xf32>
    %cst_24 = arith.constant dense<0.000000e+00> : vector<128xf32>
    %66 = vector.multi_reduction <add>, %65, %cst_24 [0] : vector<128x128xf32> to vector<128xf32>
    %67 = vector.shape_cast %66 : vector<128xf32> to vector<1x128xf32>
    %68 = arith.truncf %65 : vector<128x128xf32> to vector<128x128xbf16>
    %cst_25 = arith.constant dense<0.000000e+00> : vector<8x128xf32>
    %69 = tpu.matmul %59, %68, %cst_25 {dimension_numbers = #tpu.dot_dimension_numbers<[1], [0], [0], [1], [0, 0, 1, 1], [], []>} : vector<8x128xbf16>, vector<128x128xbf16>, vector<8x128xf32> -> vector<8x128xf32>
    %70 = tpu.reciprocal %67 {approx = true} : vector<1x128xf32> -> vector<1x128xf32>
    %71 = vector.broadcast %70 : vector<1x128xf32> to vector<8x128xf32>
    %72 = arith.mulf %69, %71 : vector<8x128xf32>
    %c0_26 = arith.constant 0 : index
    %c128_27 = arith.constant 128 : index
    %73 = vector.load %arg7[%c0_26, %c128_27] : memref<16x256xf32, #tpu.memory_space<vmem>>, vector<8x128xf32>
    tpu.vector_store %arg7[%c0_26, %c128_27], %72 {strides = array<i32>} : memref<16x256xf32, #tpu.memory_space<vmem>>, vector<8x128xf32>,
    %74 = vector.extract_strided_slice %11 {offsets = [8, 128], sizes = [8, 128], strides = [1, 1]} : vector<16x256xf32> to vector<8x128xf32>
    %75 = arith.truncf %74 : vector<8x128xf32> to vector<8x128xbf16>
    %76 = vector.extract_strided_slice %12 {offsets = [8, 128], sizes = [8, 128], strides = [1, 1]} : vector<16x256xf32> to vector<8x128xf32>
    %77 = arith.truncf %76 : vector<8x128xf32> to vector<8x128xbf16>
    %78 = vector.extract_strided_slice %13 {offsets = [8, 128], sizes = [8, 128], strides = [1, 1]} : vector<16x256xf32> to vector<8x128xf32>
    %79 = arith.truncf %78 : vector<8x128xf32> to vector<8x128xbf16>
    %cst_28 = arith.constant dense<0.000000e+00> : vector<128x128xf32>
    %80 = tpu.matmul %77, %75, %cst_28 {dimension_numbers = #tpu.dot_dimension_numbers<[0], [0], [1], [1], [0, 1, 1, 1], [], []>} : vector<8x128xbf16>, vector<8x128xbf16>, vector<128x128xf32> -> vector<128x128xf32>
    %cst_29 = arith.constant dense<0xFF800000> : vector<128xf32>
    %81 = vector.multi_reduction <maximumf>, %80, %cst_29 [0] : vector<128x128xf32> to vector<128xf32>
    %82 = vector.shape_cast %81 : vector<128xf32> to vector<1x128xf32>
    %83 = vector.broadcast %82 : vector<1x128xf32> to vector<128x128xf32>
    %84 = arith.subf %80, %83 : vector<128x128xf32>
    %85 = math.exp %84 : vector<128x128xf32>
    %cst_30 = arith.constant dense<0.000000e+00> : vector<128xf32>
    %86 = vector.multi_reduction <add>, %85, %cst_30 [0] : vector<128x128xf32> to vector<128xf32>
    %87 = vector.shape_cast %86 : vector<128xf32> to vector<1x128xf32>
    %88 = arith.truncf %85 : vector<128x128xf32> to vector<128x128xbf16>
    %cst_31 = arith.constant dense<0.000000e+00> : vector<8x128xf32>
    %89 = tpu.matmul %79, %88, %cst_31 {dimension_numbers = #tpu.dot_dimension_numbers<[1], [0], [0], [1], [0, 0, 1, 1], [], []>} : vector<8x128xbf16>, vector<128x128xbf16>, vector<8x128xf32> -> vector<8x128xf32>
    %90 = tpu.reciprocal %87 {approx = true} : vector<1x128xf32> -> vector<1x128xf32>
    %91 = vector.broadcast %90 : vector<1x128xf32> to vector<8x128xf32>
    %92 = arith.mulf %89, %91 : vector<8x128xf32>
    %c8_32 = arith.constant 8 : index
    %c128_33 = arith.constant 128 : index
    %93 = vector.load %arg7[%c8_32, %c128_33] : memref<16x256xf32, #tpu.memory_space<vmem>>, vector<8x128xf32>
    tpu.vector_store %arg7[%c8_32, %c128_33], %92 {strides = array<i32>} : memref<16x256xf32, #tpu.memory_space<vmem>>, vector<8x128xf32>,
    %c0_34 = arith.constant 0 : index
    %c0_35 = arith.constant 0 : index
    %94 = vector.load %arg4[%c0_34, %c0_35] : memref<16x4xf32, #tpu.memory_space<vmem>>, vector<16x1xf32>
    %c0_36 = arith.constant 0 : index
    %c1_37 = arith.constant 1 : index
    %95 = vector.load %arg4[%c0_36, %c1_37] : memref<16x4xf32, #tpu.memory_space<vmem>>, vector<16x1xf32>
    %c0_38 = arith.constant 0 : index
    %c2 = arith.constant 2 : index
    %96 = vector.load %arg4[%c0_38, %c2] : memref<16x4xf32, #tpu.memory_space<vmem>>, vector<16x1xf32>
    %c0_39 = arith.constant 0 : index
    %c3 = arith.constant 3 : index
    %97 = vector.load %arg4[%c0_39, %c3] : memref<16x4xf32, #tpu.memory_space<vmem>>, vector<16x1xf32>
    %c0_40 = arith.constant 0 : index
    %c0_41 = arith.constant 0 : index
    %98 = vector.load %arg7[%c0_40, %c0_41] : memref<16x256xf32, #tpu.memory_space<vmem>>, vector<16x256xf32>
    %99 = arith.addf %6, %98 : vector<16x256xf32>
    %cst_42 = arith.constant dense<0.000000e+00> : vector<16xf32>
    %100 = vector.multi_reduction <add>, %99, %cst_42 [1] : vector<16x256xf32> to vector<16xf32>
    %101 = vector.shape_cast %100 : vector<16xf32> to vector<16x1xf32>
    %102 = arith.mulf %99, %99 : vector<16x256xf32>
    %cst_43 = arith.constant dense<0.000000e+00> : vector<16xf32>
    %103 = vector.multi_reduction <add>, %102, %cst_43 [1] : vector<16x256xf32> to vector<16xf32>
    %104 = vector.shape_cast %103 : vector<16xf32> to vector<16x1xf32>
    %cst_44 = arith.constant 3.906250e-03 : f32
    %105 = vector.broadcast %cst_44 : f32 to vector<16x1xf32>
    %106 = arith.mulf %101, %105 : vector<16x1xf32>
    %cst_45 = arith.constant 3.906250e-03 : f32
    %107 = vector.broadcast %cst_45 : f32 to vector<16x1xf32>
    %108 = arith.mulf %104, %107 : vector<16x1xf32>
    %109 = arith.mulf %106, %106 : vector<16x1xf32>
    %110 = arith.subf %108, %109 : vector<16x1xf32>
    %111 = vector.broadcast %106 : vector<16x1xf32> to vector<16x256xf32>
    %112 = arith.subf %99, %111 : vector<16x256xf32>
    %cst_46 = arith.constant 9.99999974E-6 : f32
    %113 = vector.broadcast %cst_46 : f32 to vector<16x1xf32>
    %114 = arith.addf %110, %113 : vector<16x1xf32>
    %115 = math.rsqrt %114 : vector<16x1xf32>
    %116 = vector.broadcast %115 : vector<16x1xf32> to vector<16x256xf32>
    %117 = arith.mulf %112, %116 : vector<16x256xf32>
    %118 = vector.broadcast %94 : vector<16x1xf32> to vector<16x256xf32>
    %119 = arith.mulf %117, %118 : vector<16x256xf32>
    %120 = vector.broadcast %95 : vector<16x1xf32> to vector<16x256xf32>
    %121 = arith.addf %119, %120 : vector<16x256xf32>
    %c0_47 = arith.constant 0 : index
    %c0_48 = arith.constant 0 : index
    %122 = vector.load %arg2[%c0_47, %c0_48] : memref<32x16xf32, #tpu.memory_space<vmem>>, vector<32x16xf32>
    %cst_49 = arith.constant dense<0.000000e+00> : vector<32x256xf32>
    %123 = tpu.matmul %122, %121, %cst_49 {dimension_numbers = #tpu.dot_dimension_numbers<[1], [0], [0], [1], [0, 0, 1, 1], [], []>} : vector<32x16xf32>, vector<16x256xf32>, vector<32x256xf32> -> vector<32x256xf32>
    %cst_50 = arith.constant 0.000000e+00 : f32
    %124 = vector.broadcast %cst_50 : f32 to vector<32x256xf32>
    %125 = arith.cmpf oge, %123, %124 : vector<32x256xf32>
    %cst_51 = arith.constant 2.000000e-01 : f32
    %126 = vector.broadcast %cst_51 : f32 to vector<32x256xf32>
    %127 = arith.mulf %126, %123 : vector<32x256xf32>
    %128 = arith.select %125, %123, %127 : vector<32x256xi1>, vector<32x256xf32>
    %c0_52 = arith.constant 0 : index
    %c0_53 = arith.constant 0 : index
    %129 = vector.load %arg3[%c0_52, %c0_53] : memref<16x32xf32, #tpu.memory_space<vmem>>, vector<16x32xf32>
    %cst_54 = arith.constant dense<0.000000e+00> : vector<16x256xf32>
    %130 = tpu.matmul %129, %128, %cst_54 {dimension_numbers = #tpu.dot_dimension_numbers<[1], [0], [0], [1], [0, 0, 1, 1], [], []>} : vector<16x32xf32>, vector<32x256xf32>, vector<16x256xf32> -> vector<16x256xf32>
    %131 = arith.addf %121, %130 : vector<16x256xf32>
    %cst_55 = arith.constant dense<0.000000e+00> : vector<16xf32>
    %132 = vector.multi_reduction <add>, %131, %cst_55 [1] : vector<16x256xf32> to vector<16xf32>
    %133 = vector.shape_cast %132 : vector<16xf32> to vector<16x1xf32>
    %134 = arith.mulf %131, %131 : vector<16x256xf32>
    %cst_56 = arith.constant dense<0.000000e+00> : vector<16xf32>
    %135 = vector.multi_reduction <add>, %134, %cst_56 [1] : vector<16x256xf32> to vector<16xf32>
    %136 = vector.shape_cast %135 : vector<16xf32> to vector<16x1xf32>
    %cst_57 = arith.constant 3.906250e-03 : f32
    %137 = vector.broadcast %cst_57 : f32 to vector<16x1xf32>
    %138 = arith.mulf %133, %137 : vector<16x1xf32>
    %cst_58 = arith.constant 3.906250e-03 : f32
    %139 = vector.broadcast %cst_58 : f32 to vector<16x1xf32>
    %140 = arith.mulf %136, %139 : vector<16x1xf32>
    %141 = arith.mulf %138, %138 : vector<16x1xf32>
    %142 = arith.subf %140, %141 : vector<16x1xf32>
    %143 = vector.broadcast %138 : vector<16x1xf32> to vector<16x256xf32>
    %144 = arith.subf %131, %143 : vector<16x256xf32>
    %cst_59 = arith.constant 9.99999974E-6 : f32
    %145 = vector.broadcast %cst_59 : f32 to vector<16x1xf32>
    %146 = arith.addf %142, %145 : vector<16x1xf32>
    %147 = math.rsqrt %146 : vector<16x1xf32>
    %148 = vector.broadcast %147 : vector<16x1xf32> to vector<16x256xf32>
    %149 = arith.mulf %144, %148 : vector<16x256xf32>
    %150 = vector.broadcast %96 : vector<16x1xf32> to vector<16x256xf32>
    %151 = arith.mulf %149, %150 : vector<16x256xf32>
    %152 = vector.broadcast %97 : vector<16x1xf32> to vector<16x256xf32>
    %153 = arith.addf %151, %152 : vector<16x256xf32>
    %154 = vector.extract_strided_slice %153 {offsets = [0, 0], sizes = [16, 128], strides = [1, 1]} : vector<16x256xf32> to vector<16x128xf32>
    %c0_60 = arith.constant 0 : index
    %c0_61 = arith.constant 0 : index
    %c0_62 = arith.constant 0 : index
    %155 = vector.load %arg5[%c0_60, %c0_61, %c0_62] : memref<2x16x128xf32, #tpu.memory_space<vmem>>, vector<1x16x128xf32>
    %156 = vector.shape_cast %155 : vector<1x16x128xf32> to vector<16x128xf32>
    %157 = vector.shape_cast %154 : vector<16x128xf32> to vector<1x16x128xf32>
    tpu.vector_store %arg5[%c0_60, %c0_61, %c0_62], %157 {strides = array<i32>} : memref<2x16x128xf32, #tpu.memory_space<vmem>>, vector<1x16x128xf32>,
    %158 = vector.extract_strided_slice %153 {offsets = [0, 128], sizes = [16, 128], strides = [1, 1]} : vector<16x256xf32> to vector<16x128xf32>
    %c1_63 = arith.constant 1 : index
    %c0_64 = arith.constant 0 : index
    %c0_65 = arith.constant 0 : index
    %159 = vector.load %arg5[%c1_63, %c0_64, %c0_65] : memref<2x16x128xf32, #tpu.memory_space<vmem>>, vector<1x16x128xf32>
    %160 = vector.shape_cast %159 : vector<1x16x128xf32> to vector<16x128xf32>
    %161 = vector.shape_cast %158 : vector<16x128xf32> to vector<1x16x128xf32>
    tpu.vector_store %arg5[%c1_63, %c0_64, %c0_65], %161 {strides = array<i32>} : memref<2x16x128xf32, #tpu.memory_space<vmem>>, vector<1x16x128xf32>,
    return
  }
}

</mosaic_0001>

<llo_original>
// kernel: tpu_custom_call.1
$region0: #{tpu_custom_call.1}
  #allocation0 [shape = 'u32[]', space=smem, size = 0x4, offset = 0x4, fixed_abs, tag = 'smem constant byte address 0x4 - core index']
  #allocation1 [shape = 'u32[72,128]{1,0:T(1,128)}', space=vmem, size = 0x9000, scoped, tag = 'internal scratch']
  #allocation2 [shape = 'f32[16,256]{1,0:T(8,128)}', space=vmem, size = 0x4000, scoped, tag = 'scratch operand']
  #allocation3 [shape = 'f32[16,256]{1,0:T(8,128)}', space=vmem, size = 0x4000, scoped, tag = 'scratch operand']
  %s0 = inlined_call_operand.vmem [shape: f32[2,16,128], index: 0, kind: input, shape index: {}]
  %s1 = inlined_call_operand.vmem [shape: f32[48,16], index: 1, kind: input, shape index: {}]
  %s2 = inlined_call_operand.vmem [shape: f32[32,16], index: 2, kind: input, shape index: {}]
  %s3 = inlined_call_operand.vmem [shape: f32[16,32], index: 3, kind: input, shape index: {}]
  %s4 = inlined_call_operand.vmem [shape: f32[16,4], index: 4, kind: input, shape index: {}]
  %s5 = inlined_call_operand.hbm [shape: f32[2,16,128], index: 5, kind: output, shape index: {}]
  %s6 = sld [smem:[#allocation0]]
  $region30: #{tpu_custom_call.1} parent=0
    _
  %s8 = ssub.s32 1, %s6
  %s9 = scalar_select 0, %s8, %s6
  $region1: #{tpu_custom_call.1} parent=0
    #allocation4 [shape = 'u8[16384]{0}', space=vmem, size = 0x4000, scoped, tag = 'output window, operand 0, single buffered']
    #allocation5 [shape = 's32[1]{0}', space=sflag, size = 0x4, scoped, tag = 'scoped memory for tpu_custom_call.1']
    %10 = vsyncpa [#allocation5], 0
    // Predicated region
    $region2: #{tpu_custom_call.1} parent=1 // pred_check
      _
    $region3: #{tpu_custom_call.1} parent=1 // pred_check_branch
      %12 = sbr.rel (0) target = $region5
    $region4: #{tpu_custom_call.1} parent=1 // pred_region
      _
    $region5: #{tpu_custom_call.1} parent=1 // pred_fallthru
      _
    // Predicated region
    $region6: #{tpu_custom_call.1} parent=1 // pred_check
      _
    $region7: #{tpu_custom_call.1} parent=1 // pred_check_branch
      %14 = sbr.rel (0) target = $region9
    $region8: #{tpu_custom_call.1} parent=1 // pred_region
      _
    $region9: #{tpu_custom_call.1} parent=1 // pred_fallthru
      _
    // Predicated region
    $region10: #{tpu_custom_call.1} parent=1 // pred_check
      _
    $region11: #{tpu_custom_call.1} parent=1 // pred_check_branch
      %16 = sbr.rel (0) target = $region13
    $region12: #{tpu_custom_call.1} parent=1 // pred_region
      _
    $region13: #{tpu_custom_call.1} parent=1 // pred_fallthru
      _
    // Predicated region
    $region14: #{tpu_custom_call.1} parent=1 // pred_check
      _
    $region15: #{tpu_custom_call.1} parent=1 // pred_check_branch
      %18 = sbr.rel (0) target = $region17
    $region16: #{tpu_custom_call.1} parent=1 // pred_region
      _
    $region17: #{tpu_custom_call.1} parent=1 // pred_fallthru
      _
    // Predicated region
    $region18: #{tpu_custom_call.1} parent=1 // pred_check
      _
    $region19: #{tpu_custom_call.1} parent=1 // pred_check_branch
      %20 = sbr.rel (0) target = $region21
    $region20: #{tpu_custom_call.1} parent=1 // pred_region
      _
    $region21: #{tpu_custom_call.1} parent=1 // pred_fallthru
      _
    %v22 = vld [vmem:[%s0] sm:$0xff]
    %v23 = vld [vmem:[%s0 + $0x8] sm:$0xff]
    %24 = vst [vmem:[#allocation2] sm:$0xff] %v22
    %25 = vst [vmem:[#allocation2 + $0x10] sm:$0xff] %v23
    %s26 = scalar_lea.vmem %s0, 16
    %v27 = vld [vmem:[%s26] sm:$0xff]
    %v28 = vld [vmem:[%s26 + $0x8] sm:$0xff]
    %29 = vst [vmem:[#allocation2 + $0x8] sm:$0xff] %v27
    %30 = vst [vmem:[#allocation2 + $0x18] sm:$0xff] %v28
    %v31 = vld [vmem:[#allocation2] sm:$0xff]
    %v32 = vld [vmem:[#allocation2 + $0x8] sm:$0xff]
    %v33 = vld [vmem:[#allocation2 + $0x10] sm:$0xff]
    %v34 = vld [vmem:[#allocation2 + $0x18] sm:$0xff]
    %v35 = vld [vmem:[%s1] sm:$0xff]
    %v36 = vld [vmem:[%s1 + $0x8] sm:$0xff]
    %v37 = vld [vmem:[%s1 + $0x10] sm:$0xff]
    %v38 = vld [vmem:[%s1 + $0x18] sm:$0xff]
    %v39 = vld [vmem:[%s1 + $0x20] sm:$0xff]
    %v40 = vld [vmem:[%s1 + $0x28] sm:$0xff]
    %v41 = vpack.c.bf16 %v36, %v35
    %v42 = vpack.c.bf16 %v38, %v37
    %v43 = vpack.c.bf16 %v40, %v39
    %v44 = vpack.c.bf16 %v33, %v31
    %v45 = vpack.c.bf16 %v34, %v32
    %vm46 = vcmask 130048
    %v48 = vsel %vm46, %v41, 0
    %v51 = vsel %vm46, %v42, 0
    %v54 = vsel %vm46, %v43, 0
    %56 = vmatpush.bf16.msra.mxu0 0
    %57 = vmatpush.bf16.msra.mxu0 0
    %58 = vmatpush.bf16.msra.mxu0 0
    %59 = vmatpush.bf16.msra.mxu0 0
    %60 = vmatpush.bf16.msra.mxu0 0
    %61 = vmatpush.bf16.msra.mxu0 0
    %62 = vmatpush.bf16.msra.mxu0 0
    %63 = vmatpush.bf16.msra.mxu0 %v44
    %64 = vmatmul.bf16.gmra.mxu0 %v48
    %v65 = vpop.f32.mrf.mxu0
    %v66 = vadd.f32 0.0, %v65
    %v67 = vpop.f32.mrf.mxu0
    %v68 = vadd.f32 0.0, %v67
    %69 = vmatmul.bf16.gmra.mxu0 %v51
    %v70 = vpop.f32.mrf.mxu0
    %v71 = vadd.f32 0.0, %v70
    %v72 = vpop.f32.mrf.mxu0
    %v73 = vadd.f32 0.0, %v72
    %74 = vmatmul.bf16.gmra.mxu0 %v54
    %v75 = vpop.f32.mrf.mxu0
    %v76 = vadd.f32 0.0, %v75
    %v77 = vpop.f32.mrf.mxu0
    %v78 = vadd.f32 0.0, %v77
    %79 = vdwg.mxu0
    %80 = vmatpush.bf16.msra.mxu0 0
    %81 = vmatpush.bf16.msra.mxu0 0
    %82 = vmatpush.bf16.msra.mxu0 0
    %83 = vmatpush.bf16.msra.mxu0 0
    %84 = vmatpush.bf16.msra.mxu0 0
    %85 = vmatpush.bf16.msra.mxu0 0
    %86 = vmatpush.bf16.msra.mxu0 0
    %87 = vmatpush.bf16.msra.mxu0 %v45
    %88 = vmatmul.bf16.gmra.mxu0 %v48
    %v89 = vpop.f32.mrf.mxu0
    %v90 = vadd.f32 0.0, %v89
    %v91 = vpop.f32.mrf.mxu0
    %v92 = vadd.f32 0.0, %v91
    %93 = vmatmul.bf16.gmra.mxu0 %v51
    %v94 = vpop.f32.mrf.mxu0
    %v95 = vadd.f32 0.0, %v94
    %v96 = vpop.f32.mrf.mxu0
    %v97 = vadd.f32 0.0, %v96
    %98 = vmatmul.bf16.gmra.mxu0 %v54
    %v99 = vpop.f32.mrf.mxu0
    %v100 = vadd.f32 0.0, %v99
    %v101 = vpop.f32.mrf.mxu0
    %v102 = vadd.f32 0.0, %v101
    %103 = vdwg.mxu0
    %v104 = vpack.c.bf16 %v66, %v66
    %v105 = vpack.c.bf16 %v71, %v71
    %v106 = vpack.c.bf16 %v76, %v76
    %107 = vxpose.xlu0.c.b16.start [1/8] %v105, 128
    %108 = vxpose.xlu0.c.b16.cont [2/8] 0, 128
    %109 = vxpose.xlu0.c.b16.cont [3/8] 0, 128
    %110 = vxpose.xlu0.c.b16.cont [4/8] 0, 128
    %111 = vxpose.xlu0.c.b16.cont [5/8] 0, 128
    %112 = vxpose.xlu0.c.b16.cont [6/8] 0, 128
    %113 = vxpose.xlu0.c.b16.cont [7/8] 0, 128
    %114 = vxpose.xlu0.c.b16.end [8/8] 0, 128
    %v115 = vpop.trf.xlu0
    %v116 = vpop.trf.xlu0
    %v117 = vpop.trf.xlu0
    %v118 = vpop.trf.xlu0
    %v119 = vpop.trf.xlu0
    %v120 = vpop.trf.xlu0
    %v121 = vpop.trf.xlu0
    %v122 = vpop.trf.xlu0
    %vm123 = vcmask 64512
    %v125 = vsel %vm123, %v115, 0
    %v128 = vsel %vm123, %v116, 0
    %v131 = vsel %vm123, %v117, 0
    %v134 = vsel %vm123, %v118, 0
    %v137 = vsel %vm123, %v119, 0
    %v140 = vsel %vm123, %v120, 0
    %v143 = vsel %vm123, %v121, 0
    %v146 = vsel %vm123, %v122, 0
    %vm148 = vcmask 1043456
    %v150 = vsel %vm148, %v104, 0
    %152 = vmatpush.bf16.msra.mxu0 0
    %153 = vmatpush.bf16.msra.mxu0 0
    %154 = vmatpush.bf16.msra.mxu0 0
    %155 = vmatpush.bf16.msra.mxu0 0
    %156 = vmatpush.bf16.msra.mxu0 0
    %157 = vmatpush.bf16.msra.mxu0 0
    %158 = vmatpush.bf16.msra.mxu0 0
    %159 = vmatpush.bf16.msra.mxu0 %v150
    %160 = vmatmul.bf16.gmra.mxu0 %v125
    %v161 = vpop.f32.mrf.mxu0
    %v162 = vadd.f32 0.0, %v161
    %v163 = vpop.f32.mrf.mxu0
    %v164 = vadd.f32 0.0, %v163
    %165 = vmatmul.bf16.gmra.mxu0 %v128
    %v166 = vpop.f32.mrf.mxu0
    %v167 = vadd.f32 0.0, %v166
    %v168 = vpop.f32.mrf.mxu0
    %v169 = vadd.f32 0.0, %v168
    %170 = vmatmul.bf16.gmra.mxu0 %v131
    %v171 = vpop.f32.mrf.mxu0
    %v172 = vadd.f32 0.0, %v171
    %v173 = vpop.f32.mrf.mxu0
    %v174 = vadd.f32 0.0, %v173
    %175 = vmatmul.bf16.gmra.mxu0 %v134
    %v176 = vpop.f32.mrf.mxu0
    %v177 = vadd.f32 0.0, %v176
    %v178 = vpop.f32.mrf.mxu0
    %v179 = vadd.f32 0.0, %v178
    %180 = vmatmul.bf16.gmra.mxu0 %v137
    %v181 = vpop.f32.mrf.mxu0
    %v182 = vadd.f32 0.0, %v181
    %v183 = vpop.f32.mrf.mxu0
    %v184 = vadd.f32 0.0, %v183
    %185 = vmatmul.bf16.gmra.mxu0 %v140
    %v186 = vpop.f32.mrf.mxu0
    %v187 = vadd.f32 0.0, %v186
    %v188 = vpop.f32.mrf.mxu0
    %v189 = vadd.f32 0.0, %v188
    %190 = vmatmul.bf16.gmra.mxu0 %v143
    %v191 = vpop.f32.mrf.mxu0
    %v192 = vadd.f32 0.0, %v191
    %v193 = vpop.f32.mrf.mxu0
    %v194 = vadd.f32 0.0, %v193
    %195 = vmatmul.bf16.gmra.mxu0 %v146
    %v196 = vpop.f32.mrf.mxu0
    %v197 = vadd.f32 0.0, %v196
    %v198 = vpop.f32.mrf.mxu0
    %v199 = vadd.f32 0.0, %v198
    %200 = vdwg.mxu0
    %v201 = vmax.f32 %v162, %v172
    %v202 = vmax.f32 %v164, %v174
    %v203 = vmax.f32 %v167, %v177
    %v204 = vmax.f32 %v169, %v179
    %v205 = vmax.f32 %v201, %v182
    %v206 = vmax.f32 %v202, %v184
    %v207 = vmax.f32 %v203, %v187
    %v208 = vmax.f32 %v204, %v189
    %v209 = vmax.f32 %v205, %v192
    %v210 = vmax.f32 %v206, %v194
    %v211 = vmax.f32 %v207, %v197
    %v212 = vmax.f32 %v208, %v199
    %v213 = vmax.f32 %v209, %v210
    %v214 = vmax.f32 %v211, %v212
    %v215 = vmax.f32 %v213, %v214
    %v216 = vrot.slane %v215, 4
    %v217 = vmax.f32 %v215, %v216
    %v218 = vrot.slane %v217, 2
    %v219 = vmax.f32 %v217, %v218
    %v220 = vrot.slane %v219, 1
    %v221 = vmax.f32 %v219, %v220
    %v222 = vsub.f32 %v162, %v221
    %v223 = vsub.f32 %v164, %v221
    %v224 = vsub.f32 %v167, %v221
    %v225 = vsub.f32 %v169, %v221
    %v226 = vsub.f32 %v172, %v221
    %v227 = vsub.f32 %v174, %v221
    %v228 = vsub.f32 %v177, %v221
    %v229 = vsub.f32 %v179, %v221
    %v230 = vsub.f32 %v182, %v221
    %v231 = vsub.f32 %v184, %v221
    %v232 = vsub.f32 %v187, %v221
    %v233 = vsub.f32 %v189, %v221
    %v234 = vsub.f32 %v192, %v221
    %v235 = vsub.f32 %v194, %v221
    %v236 = vsub.f32 %v197, %v221
    %v237 = vsub.f32 %v199, %v221
    %v238 = vmul.f32 %v222, 1.442695
    %v239 = vpow.pop %v238
    %v240 = vmul.f32 %v223, 1.442695
    %v241 = vpow.pop %v240
    %v242 = vmul.f32 %v224, 1.442695
    %v243 = vpow.pop %v242
    %v244 = vmul.f32 %v225, 1.442695
    %v245 = vpow.pop %v244
    %v246 = vmul.f32 %v226, 1.442695
    %v247 = vpow.pop %v246
    %v248 = vmul.f32 %v227, 1.442695
    %v249 = vpow.pop %v248
    %v250 = vmul.f32 %v228, 1.442695
    %v251 = vpow.pop %v250
    %v252 = vmul.f32 %v229, 1.442695
    %v253 = vpow.pop %v252
    %v254 = vmul.f32 %v230, 1.442695
    %v255 = vpow.pop %v254
    %v256 = vmul.f32 %v231, 1.442695
    %v257 = vpow.pop %v256
    %v258 = vmul.f32 %v232, 1.442695
    %v259 = vpow.pop %v258
    %v260 = vmul.f32 %v233, 1.442695
    %v261 = vpow.pop %v260
    %v262 = vmul.f32 %v234, 1.442695
    %v263 = vpow.pop %v262
    %v264 = vmul.f32 %v235, 1.442695
    %v265 = vpow.pop %v264
    %v266 = vmul.f32 %v236, 1.442695
    %v267 = vpow.pop %v266
    %v268 = vmul.f32 %v237, 1.442695
    %v269 = vpow.pop %v268
    %v270 = vadd.f32 %v239, %v241
    %v271 = vadd.f32 %v270, %v243
    %v272 = vadd.f32 %v271, %v245
    %v273 = vadd.f32 %v272, %v247
    %v274 = vadd.f32 %v273, %v249
    %v275 = vadd.f32 %v274, %v251
    %v276 = vadd.f32 %v275, %v253
    %v277 = vadd.f32 %v276, %v255
    %v278 = vadd.f32 %v277, %v257
    %v279 = vadd.f32 %v278, %v259
    %v280 = vadd.f32 %v279, %v261
    %v281 = vadd.f32 %v280, %v263
    %v282 = vadd.f32 %v281, %v265
    %v283 = vadd.f32 %v282, %v267
    %v284 = vadd.f32 %v283, %v269
    %v285 = vrot.slane %v284, 4
    %v286 = vadd.f32 %v284, %v285
    %v287 = vrot.slane %v286, 2
    %v288 = vadd.f32 %v286, %v287
    %v289 = vrot.slane %v288, 1
    %v290 = vadd.f32 %v288, %v289
    %v291 = vpack.c.bf16 %v241, %v239
    %v292 = vpack.c.bf16 %v245, %v243
    %v293 = vpack.c.bf16 %v249, %v247
    %v294 = vpack.c.bf16 %v253, %v251
    %v295 = vpack.c.bf16 %v257, %v255
    %v296 = vpack.c.bf16 %v261, %v259
    %v297 = vpack.c.bf16 %v265, %v263
    %v298 = vpack.c.bf16 %v269, %v267
    %299 = vmatpush.bf16.msra.mxu0 %v298
    %300 = vmatpush.bf16.msra.mxu0 %v297
    %301 = vmatpush.bf16.msra.mxu0 %v296
    %302 = vmatpush.bf16.msra.mxu0 %v295
    %303 = vmatpush.bf16.msra.mxu0 %v294
    %304 = vmatpush.bf16.msra.mxu0 %v293
    %305 = vmatpush.bf16.msra.mxu0 %v292
    %306 = vmatpush.bf16.msra.mxu0 %v291
    %307 = vmatmul.bf16.gmra.mxu0 %v106
    %v308 = vpop.f32.mrf.mxu0
    %v309 = vadd.f32 0.0, %v308
    %v310 = vpop.f32.mrf.mxu0
    %311 = vdwg.mxu0
    %v312 = vrcp.pop %v290
    %v313 = vmul.f32 %v309, %v312
    %314 = vst [vmem:[#allocation3] sm:$0xff] %v313
    %v315 = vpack.c.bf16 %v68, %v68
    %v316 = vpack.c.bf16 %v73, %v73
    %v317 = vpack.c.bf16 %v78, %v78
    %318 = vxpose.xlu0.c.b16.start [1/8] %v316, 128
    %319 = vxpose.xlu0.c.b16.cont [2/8] 0, 128
    %320 = vxpose.xlu0.c.b16.cont [3/8] 0, 128
    %321 = vxpose.xlu0.c.b16.cont [4/8] 0, 128
    %322 = vxpose.xlu0.c.b16.cont [5/8] 0, 128
    %323 = vxpose.xlu0.c.b16.cont [6/8] 0, 128
    %324 = vxpose.xlu0.c.b16.cont [7/8] 0, 128
    %325 = vxpose.xlu0.c.b16.end [8/8] 0, 128
    %v326 = vpop.trf.xlu0
    %v327 = vpop.trf.xlu0
    %v328 = vpop.trf.xlu0
    %v329 = vpop.trf.xlu0
    %v330 = vpop.trf.xlu0
    %v331 = vpop.trf.xlu0
    %v332 = vpop.trf.xlu0
    %v333 = vpop.trf.xlu0
    %v335 = vsel %vm123, %v326, 0
    %v338 = vsel %vm123, %v327, 0
    %v341 = vsel %vm123, %v328, 0
    %v344 = vsel %vm123, %v329, 0
    %v347 = vsel %vm123, %v330, 0
    %v350 = vsel %vm123, %v331, 0
    %v353 = vsel %vm123, %v332, 0
    %v356 = vsel %vm123, %v333, 0
    %v359 = vsel %vm148, %v315, 0
    %361 = vmatpush.bf16.msra.mxu0 0
    %362 = vmatpush.bf16.msra.mxu0 0
    %363 = vmatpush.bf16.msra.mxu0 0
    %364 = vmatpush.bf16.msra.mxu0 0
    %365 = vmatpush.bf16.msra.mxu0 0
    %366 = vmatpush.bf16.msra.mxu0 0
    %367 = vmatpush.bf16.msra.mxu0 0
    %368 = vmatpush.bf16.msra.mxu0 %v359
    %369 = vmatmul.bf16.gmra.mxu0 %v335
    %v370 = vpop.f32.mrf.mxu0
    %v371 = vadd.f32 0.0, %v370
    %v372 = vpop.f32.mrf.mxu0
    %v373 = vadd.f32 0.0, %v372
    %374 = vmatmul.bf16.gmra.mxu0 %v338
    %v375 = vpop.f32.mrf.mxu0
    %v376 = vadd.f32 0.0, %v375
    %v377 = vpop.f32.mrf.mxu0
    %v378 = vadd.f32 0.0, %v377
    %379 = vmatmul.bf16.gmra.mxu0 %v341
    %v380 = vpop.f32.mrf.mxu0
    %v381 = vadd.f32 0.0, %v380
    %v382 = vpop.f32.mrf.mxu0
    %v383 = vadd.f32 0.0, %v382
    %384 = vmatmul.bf16.gmra.mxu0 %v344
    %v385 = vpop.f32.mrf.mxu0
    %v386 = vadd.f32 0.0, %v385
    %v387 = vpop.f32.mrf.mxu0
    %v388 = vadd.f32 0.0, %v387
    %389 = vmatmul.bf16.gmra.mxu0 %v347
    %v390 = vpop.f32.mrf.mxu0
    %v391 = vadd.f32 0.0, %v390
    %v392 = vpop.f32.mrf.mxu0
    %v393 = vadd.f32 0.0, %v392
    %394 = vmatmul.bf16.gmra.mxu0 %v350
    %v395 = vpop.f32.mrf.mxu0
    %v396 = vadd.f32 0.0, %v395
    %v397 = vpop.f32.mrf.mxu0
    %v398 = vadd.f32 0.0, %v397
    %399 = vmatmul.bf16.gmra.mxu0 %v353
    %v400 = vpop.f32.mrf.mxu0
    %v401 = vadd.f32 0.0, %v400
    %v402 = vpop.f32.mrf.mxu0
    %v403 = vadd.f32 0.0, %v402
    %404 = vmatmul.bf16.gmra.mxu0 %v356
    %v405 = vpop.f32.mrf.mxu0
    %v406 = vadd.f32 0.0, %v405
    %v407 = vpop.f32.mrf.mxu0
    %v408 = vadd.f32 0.0, %v407
    %409 = vdwg.mxu0
    %v410 = vmax.f32 %v371, %v381
    %v411 = vmax.f32 %v373, %v383
    %v412 = vmax.f32 %v376, %v386
    %v413 = vmax.f32 %v378, %v388
    %v414 = vmax.f32 %v410, %v391
    %v415 = vmax.f32 %v411, %v393
    %v416 = vmax.f32 %v412, %v396
    %v417 = vmax.f32 %v413, %v398
    %v418 = vmax.f32 %v414, %v401
    %v419 = vmax.f32 %v415, %v403
    %v420 = vmax.f32 %v416, %v406
    %v421 = vmax.f32 %v417, %v408
    %v422 = vmax.f32 %v418, %v419
    %v423 = vmax.f32 %v420, %v421
    %v424 = vmax.f32 %v422, %v423
    %v425 = vrot.slane %v424, 4
    %v426 = vmax.f32 %v424, %v425
    %v427 = vrot.slane %v426, 2
    %v428 = vmax.f32 %v426, %v427
    %v429 = vrot.slane %v428, 1
    %v430 = vmax.f32 %v428, %v429
    %v431 = vsub.f32 %v371, %v430
    %v432 = vsub.f32 %v373, %v430
    %v433 = vsub.f32 %v376, %v430
    %v434 = vsub.f32 %v378, %v430
    %v435 = vsub.f32 %v381, %v430
    %v436 = vsub.f32 %v383, %v430
    %v437 = vsub.f32 %v386, %v430
    %v438 = vsub.f32 %v388, %v430
    %v439 = vsub.f32 %v391, %v430
    %v440 = vsub.f32 %v393, %v430
    %v441 = vsub.f32 %v396, %v430
    %v442 = vsub.f32 %v398, %v430
    %v443 = vsub.f32 %v401, %v430
    %v444 = vsub.f32 %v403, %v430
    %v445 = vsub.f32 %v406, %v430
    %v446 = vsub.f32 %v408, %v430
    %v447 = vmul.f32 %v431, 1.442695
    %v448 = vpow.pop %v447
    %v449 = vmul.f32 %v432, 1.442695
    %v450 = vpow.pop %v449
    %v451 = vmul.f32 %v433, 1.442695
    %v452 = vpow.pop %v451
    %v453 = vmul.f32 %v434, 1.442695
    %v454 = vpow.pop %v453
    %v455 = vmul.f32 %v435, 1.442695
    %v456 = vpow.pop %v455
    %v457 = vmul.f32 %v436, 1.442695
    %v458 = vpow.pop %v457
    %v459 = vmul.f32 %v437, 1.442695
    %v460 = vpow.pop %v459
    %v461 = vmul.f32 %v438, 1.442695
    %v462 = vpow.pop %v461
    %v463 = vmul.f32 %v439, 1.442695
    %v464 = vpow.pop %v463
    %v465 = vmul.f32 %v440, 1.442695
    %v466 = vpow.pop %v465
    %v467 = vmul.f32 %v441, 1.442695
    %v468 = vpow.pop %v467
    %v469 = vmul.f32 %v442, 1.442695
    %v470 = vpow.pop %v469
    %v471 = vmul.f32 %v443, 1.442695
    %v472 = vpow.pop %v471
    %v473 = vmul.f32 %v444, 1.442695
    %v474 = vpow.pop %v473
    %v475 = vmul.f32 %v445, 1.442695
    %v476 = vpow.pop %v475
    %v477 = vmul.f32 %v446, 1.442695
    %v478 = vpow.pop %v477
    %v479 = vadd.f32 %v448, %v450
    %v480 = vadd.f32 %v479, %v452
    %v481 = vadd.f32 %v480, %v454
    %v482 = vadd.f32 %v481, %v456
    %v483 = vadd.f32 %v482, %v458
    %v484 = vadd.f32 %v483, %v460
    %v485 = vadd.f32 %v484, %v462
    %v486 = vadd.f32 %v485, %v464
    %v487 = vadd.f32 %v486, %v466
    %v488 = vadd.f32 %v487, %v468
    %v489 = vadd.f32 %v488, %v470
    %v490 = vadd.f32 %v489, %v472
    %v491 = vadd.f32 %v490, %v474
    %v492 = vadd.f32 %v491, %v476
    %v493 = vadd.f32 %v492, %v478
    %v494 = vrot.slane %v493, 4
    %v495 = vadd.f32 %v493, %v494
    %v496 = vrot.slane %v495, 2
    %v497 = vadd.f32 %v495, %v496
    %v498 = vrot.slane %v497, 1
    %v499 = vadd.f32 %v497, %v498
    %v500 = vpack.c.bf16 %v450, %v448
    %v501 = vpack.c.bf16 %v454, %v452
    %v502 = vpack.c.bf16 %v458, %v456
    %v503 = vpack.c.bf16 %v462, %v460
    %v504 = vpack.c.bf16 %v466, %v464
    %v505 = vpack.c.bf16 %v470, %v468
    %v506 = vpack.c.bf16 %v474, %v472
    %v507 = vpack.c.bf16 %v478, %v476
    %508 = vmatpush.bf16.msra.mxu0 %v507
    %509 = vmatpush.bf16.msra.mxu0 %v506
    %510 = vmatpush.bf16.msra.mxu0 %v505
    %511 = vmatpush.bf16.msra.mxu0 %v504
    %512 = vmatpush.bf16.msra.mxu0 %v503
    %513 = vmatpush.bf16.msra.mxu0 %v502
    %514 = vmatpush.bf16.msra.mxu0 %v501
    %515 = vmatpush.bf16.msra.mxu0 %v500
    %516 = vmatmul.bf16.gmra.mxu0 %v317
    %v517 = vpop.f32.mrf.mxu0
    %v518 = vadd.f32 0.0, %v517
    %v519 = vpop.f32.mrf.mxu0
    %520 = vdwg.mxu0
    %v521 = vrcp.pop %v499
    %v522 = vmul.f32 %v518, %v521
    %523 = vst [vmem:[#allocation3 + $0x10] sm:$0xff] %v522
    %v524 = vpack.c.bf16 %v90, %v90
    %v525 = vpack.c.bf16 %v95, %v95
    %v526 = vpack.c.bf16 %v100, %v100
    %527 = vxpose.xlu0.c.b16.start [1/8] %v525, 128
    %528 = vxpose.xlu0.c.b16.cont [2/8] 0, 128
    %529 = vxpose.xlu0.c.b16.cont [3/8] 0, 128
    %530 = vxpose.xlu0.c.b16.cont [4/8] 0, 128
    %531 = vxpose.xlu0.c.b16.cont [5/8] 0, 128
    %532 = vxpose.xlu0.c.b16.cont [6/8] 0, 128
    %533 = vxpose.xlu0.c.b16.cont [7/8] 0, 128
    %534 = vxpose.xlu0.c.b16.end [8/8] 0, 128
    %v535 = vpop.trf.xlu0
    %v536 = vpop.trf.xlu0
    %v537 = vpop.trf.xlu0
    %v538 = vpop.trf.xlu0
    %v539 = vpop.trf.xlu0
    %v540 = vpop.trf.xlu0
    %v541 = vpop.trf.xlu0
    %v542 = vpop.trf.xlu0
    %v544 = vsel %vm123, %v535, 0
    %v547 = vsel %vm123, %v536, 0
    %v550 = vsel %vm123, %v537, 0
    %v553 = vsel %vm123, %v538, 0
    %v556 = vsel %vm123, %v539, 0
    %v559 = vsel %vm123, %v540, 0
    %v562 = vsel %vm123, %v541, 0
    %v565 = vsel %vm123, %v542, 0
    %v568 = vsel %vm148, %v524, 0
    %570 = vmatpush.bf16.msra.mxu0 0
    %571 = vmatpush.bf16.msra.mxu0 0
    %572 = vmatpush.bf16.msra.mxu0 0
    %573 = vmatpush.bf16.msra.mxu0 0
    %574 = vmatpush.bf16.msra.mxu0 0
    %575 = vmatpush.bf16.msra.mxu0 0
    %576 = vmatpush.bf16.msra.mxu0 0
    %577 = vmatpush.bf16.msra.mxu0 %v568
    %578 = vmatmul.bf16.gmra.mxu0 %v544
    %v579 = vpop.f32.mrf.mxu0
    %v580 = vadd.f32 0.0, %v579
    %v581 = vpop.f32.mrf.mxu0
    %v582 = vadd.f32 0.0, %v581
    %583 = vmatmul.bf16.gmra.mxu0 %v547
    %v584 = vpop.f32.mrf.mxu0
    %v585 = vadd.f32 0.0, %v584
    %v586 = vpop.f32.mrf.mxu0
    %v587 = vadd.f32 0.0, %v586
    %588 = vmatmul.bf16.gmra.mxu0 %v550
    %v589 = vpop.f32.mrf.mxu0
    %v590 = vadd.f32 0.0, %v589
    %v591 = vpop.f32.mrf.mxu0
    %v592 = vadd.f32 0.0, %v591
    %593 = vmatmul.bf16.gmra.mxu0 %v553
    %v594 = vpop.f32.mrf.mxu0
    %v595 = vadd.f32 0.0, %v594
    %v596 = vpop.f32.mrf.mxu0
    %v597 = vadd.f32 0.0, %v596
    %598 = vmatmul.bf16.gmra.mxu0 %v556
    %v599 = vpop.f32.mrf.mxu0
    %v600 = vadd.f32 0.0, %v599
    %v601 = vpop.f32.mrf.mxu0
    %v602 = vadd.f32 0.0, %v601
    %603 = vmatmul.bf16.gmra.mxu0 %v559
    %v604 = vpop.f32.mrf.mxu0
    %v605 = vadd.f32 0.0, %v604
    %v606 = vpop.f32.mrf.mxu0
    %v607 = vadd.f32 0.0, %v606
    %608 = vmatmul.bf16.gmra.mxu0 %v562
    %v609 = vpop.f32.mrf.mxu0
    %v610 = vadd.f32 0.0, %v609
    %v611 = vpop.f32.mrf.mxu0
    %v612 = vadd.f32 0.0, %v611
    %613 = vmatmul.bf16.gmra.mxu0 %v565
    %v614 = vpop.f32.mrf.mxu0
    %v615 = vadd.f32 0.0, %v614
    %v616 = vpop.f32.mrf.mxu0
    %v617 = vadd.f32 0.0, %v616
    %618 = vdwg.mxu0
    %v619 = vmax.f32 %v580, %v590
    %v620 = vmax.f32 %v582, %v592
    %v621 = vmax.f32 %v585, %v595
    %v622 = vmax.f32 %v587, %v597
    %v623 = vmax.f32 %v619, %v600
    %v624 = vmax.f32 %v620, %v602
    %v625 = vmax.f32 %v621, %v605
    %v626 = vmax.f32 %v622, %v607
    %v627 = vmax.f32 %v623, %v610
    %v628 = vmax.f32 %v624, %v612
    %v629 = vmax.f32 %v625, %v615
    %v630 = vmax.f32 %v626, %v617
    %v631 = vmax.f32 %v627, %v628
    %v632 = vmax.f32 %v629, %v630
    %v633 = vmax.f32 %v631, %v632
    %v634 = vrot.slane %v633, 4
    %v635 = vmax.f32 %v633, %v634
    %v636 = vrot.slane %v635, 2
    %v637 = vmax.f32 %v635, %v636
    %v638 = vrot.slane %v637, 1
    %v639 = vmax.f32 %v637, %v638
    %v640 = vsub.f32 %v580, %v639
    %v641 = vsub.f32 %v582, %v639
    %v642 = vsub.f32 %v585, %v639
    %v643 = vsub.f32 %v587, %v639
    %v644 = vsub.f32 %v590, %v639
    %v645 = vsub.f32 %v592, %v639
    %v646 = vsub.f32 %v595, %v639
    %v647 = vsub.f32 %v597, %v639
    %v648 = vsub.f32 %v600, %v639
    %v649 = vsub.f32 %v602, %v639
    %v650 = vsub.f32 %v605, %v639
    %v651 = vsub.f32 %v607, %v639
    %v652 = vsub.f32 %v610, %v639
    %v653 = vsub.f32 %v612, %v639
    %v654 = vsub.f32 %v615, %v639
    %v655 = vsub.f32 %v617, %v639
    %v656 = vmul.f32 %v640, 1.442695
    %v657 = vpow.pop %v656
    %v658 = vmul.f32 %v641, 1.442695
    %v659 = vpow.pop %v658
    %v660 = vmul.f32 %v642, 1.442695
    %v661 = vpow.pop %v660
    %v662 = vmul.f32 %v643, 1.442695
    %v663 = vpow.pop %v662
    %v664 = vmul.f32 %v644, 1.442695
    %v665 = vpow.pop %v664
    %v666 = vmul.f32 %v645, 1.442695
    %v667 = vpow.pop %v666
    %v668 = vmul.f32 %v646, 1.442695
    %v669 = vpow.pop %v668
    %v670 = vmul.f32 %v647, 1.442695
    %v671 = vpow.pop %v670
    %v672 = vmul.f32 %v648, 1.442695
    %v673 = vpow.pop %v672
    %v674 = vmul.f32 %v649, 1.442695
    %v675 = vpow.pop %v674
    %v676 = vmul.f32 %v650, 1.442695
    %v677 = vpow.pop %v676
    %v678 = vmul.f32 %v651, 1.442695
    %v679 = vpow.pop %v678
    %v680 = vmul.f32 %v652, 1.442695
    %v681 = vpow.pop %v680
    %v682 = vmul.f32 %v653, 1.442695
    %v683 = vpow.pop %v682
    %v684 = vmul.f32 %v654, 1.442695
    %v685 = vpow.pop %v684
    %v686 = vmul.f32 %v655, 1.442695
    %v687 = vpow.pop %v686
    %v688 = vadd.f32 %v657, %v659
    %v689 = vadd.f32 %v688, %v661
    %v690 = vadd.f32 %v689, %v663
    %v691 = vadd.f32 %v690, %v665
    %v692 = vadd.f32 %v691, %v667
    %v693 = vadd.f32 %v692, %v669
    %v694 = vadd.f32 %v693, %v671
    %v695 = vadd.f32 %v694, %v673
    %v696 = vadd.f32 %v695, %v675
    %v697 = vadd.f32 %v696, %v677
    %v698 = vadd.f32 %v697, %v679
    %v699 = vadd.f32 %v698, %v681
    %v700 = vadd.f32 %v699, %v683
    %v701 = vadd.f32 %v700, %v685
    %v702 = vadd.f32 %v701, %v687
    %v703 = vrot.slane %v702, 4
    %v704 = vadd.f32 %v702, %v703
    %v705 = vrot.slane %v704, 2
    %v706 = vadd.f32 %v704, %v705
    %v707 = vrot.slane %v706, 1
    %v708 = vadd.f32 %v706, %v707
    %v709 = vpack.c.bf16 %v659, %v657
    %v710 = vpack.c.bf16 %v663, %v661
    %v711 = vpack.c.bf16 %v667, %v665
    %v712 = vpack.c.bf16 %v671, %v669
    %v713 = vpack.c.bf16 %v675, %v673
    %v714 = vpack.c.bf16 %v679, %v677
    %v715 = vpack.c.bf16 %v683, %v681
    %v716 = vpack.c.bf16 %v687, %v685
    %717 = vmatpush.bf16.msra.mxu0 %v716
    %718 = vmatpush.bf16.msra.mxu0 %v715
    %719 = vmatpush.bf16.msra.mxu0 %v714
    %720 = vmatpush.bf16.msra.mxu0 %v713
    %721 = vmatpush.bf16.msra.mxu0 %v712
    %722 = vmatpush.bf16.msra.mxu0 %v711
    %723 = vmatpush.bf16.msra.mxu0 %v710
    %724 = vmatpush.bf16.msra.mxu0 %v709
    %725 = vmatmul.bf16.gmra.mxu0 %v526
    %v726 = vpop.f32.mrf.mxu0
    %v727 = vadd.f32 0.0, %v726
    %v728 = vpop.f32.mrf.mxu0
    %729 = vdwg.mxu0
    %v730 = vrcp.pop %v708
    %v731 = vmul.f32 %v727, %v730
    %732 = vst [vmem:[#allocation3 + $0x8] sm:$0xff] %v731
    %v733 = vpack.c.bf16 %v92, %v92
    %v734 = vpack.c.bf16 %v97, %v97
    %v735 = vpack.c.bf16 %v102, %v102
    %736 = vxpose.xlu0.c.b16.start [1/8] %v734, 128
    %737 = vxpose.xlu0.c.b16.cont [2/8] 0, 128
    %738 = vxpose.xlu0.c.b16.cont [3/8] 0, 128
    %739 = vxpose.xlu0.c.b16.cont [4/8] 0, 128
    %740 = vxpose.xlu0.c.b16.cont [5/8] 0, 128
    %741 = vxpose.xlu0.c.b16.cont [6/8] 0, 128
    %742 = vxpose.xlu0.c.b16.cont [7/8] 0, 128
    %743 = vxpose.xlu0.c.b16.end [8/8] 0, 128
    %v744 = vpop.trf.xlu0
    %v745 = vpop.trf.xlu0
    %v746 = vpop.trf.xlu0
    %v747 = vpop.trf.xlu0
    %v748 = vpop.trf.xlu0
    %v749 = vpop.trf.xlu0
    %v750 = vpop.trf.xlu0
    %v751 = vpop.trf.xlu0
    %v753 = vsel %vm123, %v744, 0
    %v756 = vsel %vm123, %v745, 0
    %v759 = vsel %vm123, %v746, 0
    %v762 = vsel %vm123, %v747, 0
    %v765 = vsel %vm123, %v748, 0
    %v768 = vsel %vm123, %v749, 0
    %v771 = vsel %vm123, %v750, 0
    %v774 = vsel %vm123, %v751, 0
    %v777 = vsel %vm148, %v733, 0
    %779 = vmatpush.bf16.msra.mxu0 0
    %780 = vmatpush.bf16.msra.mxu0 0
    %781 = vmatpush.bf16.msra.mxu0 0
    %782 = vmatpush.bf16.msra.mxu0 0
    %783 = vmatpush.bf16.msra.mxu0 0
    %784 = vmatpush.bf16.msra.mxu0 0
    %785 = vmatpush.bf16.msra.mxu0 0
    %786 = vmatpush.bf16.msra.mxu0 %v777
    %787 = vmatmul.bf16.gmra.mxu0 %v753
    %v788 = vpop.f32.mrf.mxu0
    %v789 = vadd.f32 0.0, %v788
    %v790 = vpop.f32.mrf.mxu0
    %v791 = vadd.f32 0.0, %v790
    %792 = vmatmul.bf16.gmra.mxu0 %v756
    %v793 = vpop.f32.mrf.mxu0
    %v794 = vadd.f32 0.0, %v793
    %v795 = vpop.f32.mrf.mxu0
    %v796 = vadd.f32 0.0, %v795
    %797 = vmatmul.bf16.gmra.mxu0 %v759
    %v798 = vpop.f32.mrf.mxu0
    %v799 = vadd.f32 0.0, %v798
    %v800 = vpop.f32.mrf.mxu0
    %v801 = vadd.f32 0.0, %v800
    %802 = vmatmul.bf16.gmra.mxu0 %v762
    %v803 = vpop.f32.mrf.mxu0
    %v804 = vadd.f32 0.0, %v803
    %v805 = vpop.f32.mrf.mxu0
    %v806 = vadd.f32 0.0, %v805
    %807 = vmatmul.bf16.gmra.mxu0 %v765
    %v808 = vpop.f32.mrf.mxu0
    %v809 = vadd.f32 0.0, %v808
    %v810 = vpop.f32.mrf.mxu0
    %v811 = vadd.f32 0.0, %v810
    %812 = vmatmul.bf16.gmra.mxu0 %v768
    %v813 = vpop.f32.mrf.mxu0
    %v814 = vadd.f32 0.0, %v813
    %v815 = vpop.f32.mrf.mxu0
    %v816 = vadd.f32 0.0, %v815
    %817 = vmatmul.bf16.gmra.mxu0 %v771
    %v818 = vpop.f32.mrf.mxu0
    %v819 = vadd.f32 0.0, %v818
    %v820 = vpop.f32.mrf.mxu0
    %v821 = vadd.f32 0.0, %v820
    %822 = vmatmul.bf16.gmra.mxu0 %v774
    %v823 = vpop.f32.mrf.mxu0
    %v824 = vadd.f32 0.0, %v823
    %v825 = vpop.f32.mrf.mxu0
    %v826 = vadd.f32 0.0, %v825
    %827 = vdwg.mxu0
    %v828 = vmax.f32 %v789, %v799
    %v829 = vmax.f32 %v791, %v801
    %v830 = vmax.f32 %v794, %v804
    %v831 = vmax.f32 %v796, %v806
    %v832 = vmax.f32 %v828, %v809
    %v833 = vmax.f32 %v829, %v811
    %v834 = vmax.f32 %v830, %v814
    %v835 = vmax.f32 %v831, %v816
    %v836 = vmax.f32 %v832, %v819
    %v837 = vmax.f32 %v833, %v821
    %v838 = vmax.f32 %v834, %v824
    %v839 = vmax.f32 %v835, %v826
    %v840 = vmax.f32 %v836, %v837
    %v841 = vmax.f32 %v838, %v839
    %v842 = vmax.f32 %v840, %v841
    %v843 = vrot.slane %v842, 4
    %v844 = vmax.f32 %v842, %v843
    %v845 = vrot.slane %v844, 2
    %v846 = vmax.f32 %v844, %v845
    %v847 = vrot.slane %v846, 1
    %v848 = vmax.f32 %v846, %v847
    %v849 = vsub.f32 %v789, %v848
    %v850 = vsub.f32 %v791, %v848
    %v851 = vsub.f32 %v794, %v848
    %v852 = vsub.f32 %v796, %v848
    %v853 = vsub.f32 %v799, %v848
    %v854 = vsub.f32 %v801, %v848
    %v855 = vsub.f32 %v804, %v848
    %v856 = vsub.f32 %v806, %v848
    %v857 = vsub.f32 %v809, %v848
    %v858 = vsub.f32 %v811, %v848
    %v859 = vsub.f32 %v814, %v848
    %v860 = vsub.f32 %v816, %v848
    %v861 = vsub.f32 %v819, %v848
    %v862 = vsub.f32 %v821, %v848
    %v863 = vsub.f32 %v824, %v848
    %v864 = vsub.f32 %v826, %v848
    %v865 = vmul.f32 %v849, 1.442695
    %v866 = vpow.pop %v865
    %v867 = vmul.f32 %v850, 1.442695
    %v868 = vpow.pop %v867
    %v869 = vmul.f32 %v851, 1.442695
    %v870 = vpow.pop %v869
    %v871 = vmul.f32 %v852, 1.442695
    %v872 = vpow.pop %v871
    %v873 = vmul.f32 %v853, 1.442695
    %v874 = vpow.pop %v873
    %v875 = vmul.f32 %v854, 1.442695
    %v876 = vpow.pop %v875
    %v877 = vmul.f32 %v855, 1.442695
    %v878 = vpow.pop %v877
    %v879 = vmul.f32 %v856, 1.442695
    %v880 = vpow.pop %v879
    %v881 = vmul.f32 %v857, 1.442695
    %v882 = vpow.pop %v881
    %v883 = vmul.f32 %v858, 1.442695
    %v884 = vpow.pop %v883
    %v885 = vmul.f32 %v859, 1.442695
    %v886 = vpow.pop %v885
    %v887 = vmul.f32 %v860, 1.442695
    %v888 = vpow.pop %v887
    %v889 = vmul.f32 %v861, 1.442695
    %v890 = vpow.pop %v889
    %v891 = vmul.f32 %v862, 1.442695
    %v892 = vpow.pop %v891
    %v893 = vmul.f32 %v863, 1.442695
    %v894 = vpow.pop %v893
    %v895 = vmul.f32 %v864, 1.442695
    %v896 = vpow.pop %v895
    %v897 = vadd.f32 %v866, %v868
    %v898 = vadd.f32 %v897, %v870
    %v899 = vadd.f32 %v898, %v872
    %v900 = vadd.f32 %v899, %v874
    %v901 = vadd.f32 %v900, %v876
    %v902 = vadd.f32 %v901, %v878
    %v903 = vadd.f32 %v902, %v880
    %v904 = vadd.f32 %v903, %v882
    %v905 = vadd.f32 %v904, %v884
    %v906 = vadd.f32 %v905, %v886
    %v907 = vadd.f32 %v906, %v888
    %v908 = vadd.f32 %v907, %v890
    %v909 = vadd.f32 %v908, %v892
    %v910 = vadd.f32 %v909, %v894
    %v911 = vadd.f32 %v910, %v896
    %v912 = vrot.slane %v911, 4
    %v913 = vadd.f32 %v911, %v912
    %v914 = vrot.slane %v913, 2
    %v915 = vadd.f32 %v913, %v914
    %v916 = vrot.slane %v915, 1
    %v917 = vadd.f32 %v915, %v916
    %v918 = vpack.c.bf16 %v868, %v866
    %v919 = vpack.c.bf16 %v872, %v870
    %v920 = vpack.c.bf16 %v876, %v874
    %v921 = vpack.c.bf16 %v880, %v878
    %v922 = vpack.c.bf16 %v884, %v882
    %v923 = vpack.c.bf16 %v888, %v886
    %v924 = vpack.c.bf16 %v892, %v890
    %v925 = vpack.c.bf16 %v896, %v894
    %926 = vmatpush.bf16.msra.mxu0 %v925
    %927 = vmatpush.bf16.msra.mxu0 %v924
    %928 = vmatpush.bf16.msra.mxu0 %v923
    %929 = vmatpush.bf16.msra.mxu0 %v922
    %930 = vmatpush.bf16.msra.mxu0 %v921
    %931 = vmatpush.bf16.msra.mxu0 %v920
    %932 = vmatpush.bf16.msra.mxu0 %v919
    %933 = vmatpush.bf16.msra.mxu0 %v918
    %934 = vmatmul.bf16.gmra.mxu0 %v735
    %v935 = vpop.f32.mrf.mxu0
    %v936 = vadd.f32 0.0, %v935
    %v937 = vpop.f32.mrf.mxu0
    %938 = vdwg.mxu0
    %v939 = vrcp.pop %v917
    %v940 = vmul.f32 %v936, %v939
    %941 = vst [vmem:[#allocation3 + $0x18] sm:$0xff] %v940
    %v942 = vld [vmem:[%s4] sm:$0xff]
    %v943 = vld [vmem:[%s4 + $0x8] sm:$0xff]
    %v944 = vld [vmem:[#allocation3] sm:$0xff]
    %v945 = vld [vmem:[#allocation3 + $0x8] sm:$0xff]
    %v946 = vld [vmem:[#allocation3 + $0x10] sm:$0xff]
    %v947 = vld [vmem:[#allocation3 + $0x18] sm:$0xff]
    %v948 = vadd.f32 %v31, %v944
    %v949 = vadd.f32 %v32, %v945
    %v950 = vadd.f32 %v33, %v946
    %v951 = vadd.f32 %v34, %v947
    %v952 = vadd.f32 %v948, %v949
    %953 = vadd.xlane.f32.xlu0 %v952
    %v954 = vpop.xlane.xlu0 %953
    %v955 = vadd.f32 %v950, %v951
    %956 = vadd.xlane.f32.xlu0 %v955
    %v957 = vpop.xlane.xlu0 %956
    %v958 = vmul.f32 %v948, %v948
    %v959 = vmul.f32 %v949, %v949
    %v960 = vmul.f32 %v950, %v950
    %v961 = vmul.f32 %v951, %v951
    %v962 = vadd.f32 %v958, %v959
    %963 = vadd.xlane.f32.xlu0 %v962
    %v964 = vpop.xlane.xlu0 %963
    %v965 = vadd.f32 %v960, %v961
    %966 = vadd.xlane.f32.xlu0 %v965
    %v967 = vpop.xlane.xlu0 %966
    %v968 = vmul.f32 %v954, 0.00390625
    %v969 = vmul.f32 %v957, 0.00390625
    %v970 = vmul.f32 %v964, 0.00390625
    %v971 = vmul.f32 %v967, 0.00390625
    %v972 = vmul.f32 %v968, %v968
    %v973 = vmul.f32 %v969, %v969
    %v974 = vsub.f32 %v970, %v972
    %v975 = vsub.f32 %v971, %v973
    %v976 = vsub.f32 %v948, %v968
    %v977 = vsub.f32 %v949, %v968
    %v978 = vsub.f32 %v950, %v969
    %v979 = vsub.f32 %v951, %v969
    %v980 = vadd.f32 %v974, 1e-05
    %v981 = vadd.f32 %v975, 1e-05
    %v982 = vrsqrt.pop %v980
    %v983 = vmul.f32 %v982, %v980
    %v984 = vmul.f32 %v983, %v982
    %v985 = vmul.f32 0.5, %v984
    %v986 = vsub.f32 1.5, %v985
    %v987 = vmul.f32 %v982, %v986
    %vm988 = vweird.f32 %v980
    %vm989 = vweird.f32 %v982
    %vm990 = vmor %vm988, %vm989
    %v991 = vsel %vm990, %v982, %v987
    %v992 = vrsqrt.pop %v981
    %v993 = vmul.f32 %v992, %v981
    %v994 = vmul.f32 %v993, %v992
    %v995 = vmul.f32 0.5, %v994
    %v996 = vsub.f32 1.5, %v995
    %v997 = vmul.f32 %v992, %v996
    %vm998 = vweird.f32 %v981
    %vm999 = vweird.f32 %v992
    %vm1000 = vmor %vm998, %vm999
    %v1001 = vsel %vm1000, %v992, %v997
    %v1002 = vmul.f32 %v976, %v991
    %v1003 = vmul.f32 %v977, %v991
    %v1004 = vmul.f32 %v978, %v1001
    %v1005 = vmul.f32 %v979, %v1001
    %1007 = vset.pattern.permute.xlu0 0
    %1008 = vperm.xlu0 %1007, %v942
    %v1009 = vpop.permute.xlu0 %1008
    %1012 = vset.pattern.permute.xlu0 0
    %1013 = vperm.xlu0 %1012, %v943
    %v1014 = vpop.permute.xlu0 %1013
    %v1016 = vmul.f32 %v1002, %v1009
    %v1017 = vmul.f32 %v1003, %v1009
    %v1018 = vmul.f32 %v1004, %v1014
    %v1019 = vmul.f32 %v1005, %v1014
    %1020 = vset.pattern.permute.xlu0 1
    %1021 = vperm.xlu0 %1020, %v942
    %v1022 = vpop.permute.xlu0 %1021
    %1024 = vset.pattern.permute.xlu0 1
    %1025 = vperm.xlu0 %1024, %v943
    %v1026 = vpop.permute.xlu0 %1025
    %v1028 = vadd.f32 %v1016, %v1022
    %v1029 = vadd.f32 %v1017, %v1022
    %v1030 = vadd.f32 %v1018, %v1026
    %v1031 = vadd.f32 %v1019, %v1026
    %v1032 = vld [vmem:[%s2] sm:$0xff]
    %v1033 = vld [vmem:[%s2 + $0x8] sm:$0xff]
    %v1034 = vld [vmem:[%s2 + $0x10] sm:$0xff]
    %v1035 = vld [vmem:[%s2 + $0x18] sm:$0xff]
    %v1037 = vsel %vm46, %v1032, 0
    %v1040 = vsel %vm46, %v1033, 0
    %v1043 = vsel %vm46, %v1034, 0
    %v1046 = vsel %vm46, %v1035, 0
    %1048 = vmatpush.msra.mxu0 0.0
    %1049 = vmatpush.msra.mxu0 0.0
    %1050 = vmatpush.msra.mxu0 0.0
    %1051 = vmatpush.msra.mxu0 0.0
    %1052 = vmatpush.msra.mxu0 0.0
    %1053 = vmatpush.msra.mxu0 0.0
    %1054 = vmatpush.msra.mxu0 0.0
    %1055 = vmatpush.msra.mxu0 0.0
    %1056 = vmatpush.msra.mxu0 0.0
    %1057 = vmatpush.msra.mxu0 0.0
    %1058 = vmatpush.msra.mxu0 0.0
    %1059 = vmatpush.msra.mxu0 0.0
    %1060 = vmatpush.msra.mxu0 0.0
    %1061 = vmatpush.msra.mxu0 0.0
    %1062 = vmatpush.msra.mxu0 %v1030
    %1063 = vmatpush.msra.mxu0 %v1028
    %1064 = vmatmul.f32.gmra.mxu0 %v1037
    %v1065 = vpop.f32.mrf.mxu0
    %v1066 = vadd.f32 0.0, %v1065
    %1067 = vmatmul.f32.gmra.mxu0 %v1040
    %v1068 = vpop.f32.mrf.mxu0
    %v1069 = vadd.f32 0.0, %v1068
    %1070 = vmatmul.f32.gmra.mxu0 %v1043
    %v1071 = vpop.f32.mrf.mxu0
    %v1072 = vadd.f32 0.0, %v1071
    %1073 = vmatmul.f32.gmra.mxu0 %v1046
    %v1074 = vpop.f32.mrf.mxu0
    %v1075 = vadd.f32 0.0, %v1074
    %1076 = vdwg.mxu0
    %1077 = vmatpush.msra.mxu0 0.0
    %1078 = vmatpush.msra.mxu0 0.0
    %1079 = vmatpush.msra.mxu0 0.0
    %1080 = vmatpush.msra.mxu0 0.0
    %1081 = vmatpush.msra.mxu0 0.0
    %1082 = vmatpush.msra.mxu0 0.0
    %1083 = vmatpush.msra.mxu0 0.0
    %1084 = vmatpush.msra.mxu0 0.0
    %1085 = vmatpush.msra.mxu0 0.0
    %1086 = vmatpush.msra.mxu0 0.0
    %1087 = vmatpush.msra.mxu0 0.0
    %1088 = vmatpush.msra.mxu0 0.0
    %1089 = vmatpush.msra.mxu0 0.0
    %1090 = vmatpush.msra.mxu0 0.0
    %1091 = vmatpush.msra.mxu0 %v1031
    %1092 = vmatpush.msra.mxu0 %v1029
    %1093 = vmatmul.f32.gmra.mxu0 %v1037
    %v1094 = vpop.f32.mrf.mxu0
    %v1095 = vadd.f32 0.0, %v1094
    %1096 = vmatmul.f32.gmra.mxu0 %v1040
    %v1097 = vpop.f32.mrf.mxu0
    %v1098 = vadd.f32 0.0, %v1097
    %1099 = vmatmul.f32.gmra.mxu0 %v1043
    %v1100 = vpop.f32.mrf.mxu0
    %v1101 = vadd.f32 0.0, %v1100
    %1102 = vmatmul.f32.gmra.mxu0 %v1046
    %v1103 = vpop.f32.mrf.mxu0
    %v1104 = vadd.f32 0.0, %v1103
    %1105 = vdwg.mxu0
    %vm1106 = vcmp.ge.f32.partialorder %v1066, 0.0
    %vm1107 = vcmp.ge.f32.partialorder %v1095, 0.0
    %vm1108 = vcmp.ge.f32.partialorder %v1069, 0.0
    %vm1109 = vcmp.ge.f32.partialorder %v1098, 0.0
    %vm1110 = vcmp.ge.f32.partialorder %v1072, 0.0
    %vm1111 = vcmp.ge.f32.partialorder %v1101, 0.0
    %vm1112 = vcmp.ge.f32.partialorder %v1075, 0.0
    %vm1113 = vcmp.ge.f32.partialorder %v1104, 0.0
    %v1114 = vmul.f32 %v1066, 0.2
    %v1115 = vmul.f32 %v1095, 0.2
    %v1116 = vmul.f32 %v1069, 0.2
    %v1117 = vmul.f32 %v1098, 0.2
    %v1118 = vmul.f32 %v1072, 0.2
    %v1119 = vmul.f32 %v1101, 0.2
    %v1120 = vmul.f32 %v1075, 0.2
    %v1121 = vmul.f32 %v1104, 0.2
    %v1122 = vsel %vm1106, %v1066, %v1114
    %v1123 = vsel %vm1107, %v1095, %v1115
    %v1124 = vsel %vm1108, %v1069, %v1116
    %v1125 = vsel %vm1109, %v1098, %v1117
    %v1126 = vsel %vm1110, %v1072, %v1118
    %v1127 = vsel %vm1111, %v1101, %v1119
    %v1128 = vsel %vm1112, %v1075, %v1120
    %v1129 = vsel %vm1113, %v1104, %v1121
    %v1130 = vld [vmem:[%s3] sm:$0xff]
    %v1131 = vld [vmem:[%s3 + $0x8] sm:$0xff]
    %vm1132 = vcmask 261120
    %v1134 = vsel %vm1132, %v1130, 0
    %v1137 = vsel %vm1132, %v1131, 0
    %1139 = vmatpush.msra.mxu0 0.0
    %1140 = vmatpush.msra.mxu0 0.0
    %1141 = vmatpush.msra.mxu0 0.0
    %1142 = vmatpush.msra.mxu0 0.0
    %1143 = vmatpush.msra.mxu0 0.0
    %1144 = vmatpush.msra.mxu0 0.0
    %1145 = vmatpush.msra.mxu0 0.0
    %1146 = vmatpush.msra.mxu0 0.0
    %1147 = vmatpush.msra.mxu0 0.0
    %1148 = vmatpush.msra.mxu0 0.0
    %1149 = vmatpush.msra.mxu0 0.0
    %1150 = vmatpush.msra.mxu0 0.0
    %1151 = vmatpush.msra.mxu0 %v1128
    %1152 = vmatpush.msra.mxu0 %v1126
    %1153 = vmatpush.msra.mxu0 %v1124
    %1154 = vmatpush.msra.mxu0 %v1122
    %1155 = vmatmul.f32.gmra.mxu0 %v1134
    %v1156 = vpop.f32.mrf.mxu0
    %v1157 = vadd.f32 0.0, %v1156
    %1158 = vmatmul.f32.gmra.mxu0 %v1137
    %v1159 = vpop.f32.mrf.mxu0
    %v1160 = vadd.f32 0.0, %v1159
    %1161 = vdwg.mxu0
    %1162 = vmatpush.msra.mxu0 0.0
    %1163 = vmatpush.msra.mxu0 0.0
    %1164 = vmatpush.msra.mxu0 0.0
    %1165 = vmatpush.msra.mxu0 0.0
    %1166 = vmatpush.msra.mxu0 0.0
    %1167 = vmatpush.msra.mxu0 0.0
    %1168 = vmatpush.msra.mxu0 0.0
    %1169 = vmatpush.msra.mxu0 0.0
    %1170 = vmatpush.msra.mxu0 0.0
    %1171 = vmatpush.msra.mxu0 0.0
    %1172 = vmatpush.msra.mxu0 0.0
    %1173 = vmatpush.msra.mxu0 0.0
    %1174 = vmatpush.msra.mxu0 %v1129
    %1175 = vmatpush.msra.mxu0 %v1127
    %1176 = vmatpush.msra.mxu0 %v1125
    %1177 = vmatpush.msra.mxu0 %v1123
    %1178 = vmatmul.f32.gmra.mxu0 %v1134
    %v1179 = vpop.f32.mrf.mxu0
    %v1180 = vadd.f32 0.0, %v1179
    %1181 = vmatmul.f32.gmra.mxu0 %v1137
    %v1182 = vpop.f32.mrf.mxu0
    %v1183 = vadd.f32 0.0, %v1182
    %1184 = vdwg.mxu0
    %v1185 = vadd.f32 %v1028, %v1157
    %v1186 = vadd.f32 %v1029, %v1180
    %v1187 = vadd.f32 %v1030, %v1160
    %v1188 = vadd.f32 %v1031, %v1183
    %v1189 = vadd.f32 %v1185, %v1186
    %1190 = vadd.xlane.f32.xlu0 %v1189
    %v1191 = vpop.xlane.xlu0 %1190
    %v1192 = vadd.f32 %v1187, %v1188
    %1193 = vadd.xlane.f32.xlu0 %v1192
    %v1194 = vpop.xlane.xlu0 %1193
    %v1195 = vmul.f32 %v1185, %v1185
    %v1196 = vmul.f32 %v1186, %v1186
    %v1197 = vmul.f32 %v1187, %v1187
    %v1198 = vmul.f32 %v1188, %v1188
    %v1199 = vadd.f32 %v1195, %v1196
    %1200 = vadd.xlane.f32.xlu0 %v1199
    %v1201 = vpop.xlane.xlu0 %1200
    %v1202 = vadd.f32 %v1197, %v1198
    %1203 = vadd.xlane.f32.xlu0 %v1202
    %v1204 = vpop.xlane.xlu0 %1203
    %v1205 = vmul.f32 %v1191, 0.00390625
    %v1206 = vmul.f32 %v1194, 0.00390625
    %v1207 = vmul.f32 %v1201, 0.00390625
    %v1208 = vmul.f32 %v1204, 0.00390625
    %v1209 = vmul.f32 %v1205, %v1205
    %v1210 = vmul.f32 %v1206, %v1206
    %v1211 = vsub.f32 %v1207, %v1209
    %v1212 = vsub.f32 %v1208, %v1210
    %v1213 = vsub.f32 %v1185, %v1205
    %v1214 = vsub.f32 %v1186, %v1205
    %v1215 = vsub.f32 %v1187, %v1206
    %v1216 = vsub.f32 %v1188, %v1206
    %v1217 = vadd.f32 %v1211, 1e-05
    %v1218 = vadd.f32 %v1212, 1e-05
    %v1219 = vrsqrt.pop %v1217
    %v1220 = vmul.f32 %v1219, %v1217
    %v1221 = vmul.f32 %v1220, %v1219
    %v1222 = vmul.f32 0.5, %v1221
    %v1223 = vsub.f32 1.5, %v1222
    %v1224 = vmul.f32 %v1219, %v1223
    %vm1225 = vweird.f32 %v1217
    %vm1226 = vweird.f32 %v1219
    %vm1227 = vmor %vm1225, %vm1226
    %v1228 = vsel %vm1227, %v1219, %v1224
    %v1229 = vrsqrt.pop %v1218
    %v1230 = vmul.f32 %v1229, %v1218
    %v1231 = vmul.f32 %v1230, %v1229
    %v1232 = vmul.f32 0.5, %v1231
    %v1233 = vsub.f32 1.5, %v1232
    %v1234 = vmul.f32 %v1229, %v1233
    %vm1235 = vweird.f32 %v1218
    %vm1236 = vweird.f32 %v1229
    %vm1237 = vmor %vm1235, %vm1236
    %v1238 = vsel %vm1237, %v1229, %v1234
    %v1239 = vmul.f32 %v1213, %v1228
    %v1240 = vmul.f32 %v1214, %v1228
    %v1241 = vmul.f32 %v1215, %v1238
    %v1242 = vmul.f32 %v1216, %v1238
    %1243 = vset.pattern.permute.xlu0 2
    %1244 = vperm.xlu0 %1243, %v942
    %v1245 = vpop.permute.xlu0 %1244
    %1247 = vset.pattern.permute.xlu0 2
    %1248 = vperm.xlu0 %1247, %v943
    %v1249 = vpop.permute.xlu0 %1248
    %v1251 = vmul.f32 %v1239, %v1245
    %v1252 = vmul.f32 %v1240, %v1245
    %v1253 = vmul.f32 %v1241, %v1249
    %v1254 = vmul.f32 %v1242, %v1249
    %1255 = vset.pattern.permute.xlu0 3
    %1256 = vperm.xlu0 %1255, %v942
    %v1257 = vpop.permute.xlu0 %1256
    %1259 = vset.pattern.permute.xlu0 3
    %1260 = vperm.xlu0 %1259, %v943
    %v1261 = vpop.permute.xlu0 %1260
    %v1263 = vadd.f32 %v1251, %v1257
    %v1264 = vadd.f32 %v1252, %v1257
    %v1265 = vadd.f32 %v1253, %v1261
    %v1266 = vadd.f32 %v1254, %v1261
    %1267 = vst [vmem:[#allocation4] sm:$0xff] %v1263
    %1268 = vst [vmem:[#allocation4 + $0x8] sm:$0xff] %v1265
    %s1269 = scalar_lea.vmem [#allocation4], 16
    %1270 = vst [vmem:[%s1269] sm:$0xff] %v1264
    %1271 = vst [vmem:[%s1269 + $0x8] sm:$0xff] %v1266
    // Predicated region
    $region22: #{tpu_custom_call.1} parent=1 // pred_check
      _
    $region23: #{tpu_custom_call.1} parent=1 // pred_check_branch
      %1273 = sbr.rel (0) target = $region25
    $region24: #{tpu_custom_call.1} parent=1 // pred_region
      %1275 = vsyncadd [#allocation5], 0
      %s1276 = sshll.u32 [#allocation4], 4
      %s1277 = int_to_ptr.vmem [resolvable:$true] %s1276
      %s1278 = sshll.u32 %s5, 4
      %s1279 = int_to_ptr.hbm [resolvable:$true] %s1278
      %1284 = dma.vmem_to_hbm [thread:$0]  %s1277, 512, %s1279, [#allocation5], 128, 128, 8
    $region25: #{tpu_custom_call.1} parent=1 // pred_fallthru
      _
    // Predicated region
    $region26: #{tpu_custom_call.1} parent=1 // pred_check
      _
    $region27: #{tpu_custom_call.1} parent=1 // pred_check_branch
      %1286 = sbr.rel (0) target = $region29
    $region28: #{tpu_custom_call.1} parent=1 // pred_region
      %1288 = dma.done [#allocation5], 512
    $region29: #{tpu_custom_call.1} parent=1 // pred_fallthru
      _
    %1289 = vsyncpa [#allocation5], 1

</llo_original>
